<compile_context>
chip_gen: v7x
topology: tpu7x:2x2x1
jax: 0.10.0
libtpu: 0.0.40
codegen_flags: <defaults>
</compile_context>

<pallas_src>
import math

import jax
import jax.numpy as jnp
from jax.experimental import pallas as pl
from jax.experimental.pallas import tpu as pltpu


def _make_mha_kernel(B, S, T, D, H, has_mask, causal, matmul_dtype):
    Dh = D // H
    G = H * B                       # (head, batch) groups
    scale = 1.0 / math.sqrt(Dh)

    def head_major(x):
        """(A, H, Dh) -> (H, A, Dh); lane (Dh) axis unchanged."""
        if hasattr(pltpu, "einshape"):
            return pltpu.einshape("ahd->had", x)
        return jnp.swapaxes(x, 0, 1)          # fallback for older jax versions

    def head_minor(x):
        """(H, A, Dh) -> (A, H, Dh)."""
        if hasattr(pltpu, "einshape"):
            return pltpu.einshape("had->ahd", x)
        return jnp.swapaxes(x, 0, 1)

    def split_heads(x_rows, A):
        """(B*A, D) -> (H*B, A, Dh); g = h*B + b."""
        xh = head_major(x_rows.reshape(B * A, H, Dh))   # (H, B*A, Dh)
        return xh.reshape(G, A, Dh)

    def merge_heads(yh):
        """(H*B, S, Dh) -> (B*S, D)."""
        y = head_minor(yh.reshape(H, B * S, Dh))        # (B*S, H, Dh)
        return y.reshape(B * S, D)

    def kernel(*refs):
        if has_mask:
            (q_ref, k_ref, v_ref, wq_ref, bq_ref, wk_ref, bk_ref,
             wv_ref, bv_ref, wo_ref, bo_ref, mask_ref, o_ref) = refs
        else:
            (q_ref, k_ref, v_ref, wq_ref, bq_ref, wk_ref, bk_ref,
             wv_ref, bv_ref, wo_ref, bo_ref, o_ref) = refs
            mask_ref = None

        def project(x_rows, w_ref, b_ref):
            y = jnp.dot(x_rows.astype(matmul_dtype),
                        w_ref[...].astype(matmul_dtype),
                        preferred_element_type=jnp.float32)
            return y + b_ref[...].astype(jnp.float32)

        # Batched projections: (B*S, D) x (D, D) keeps the MXU well fed.
        q = project(q_ref[...].reshape(B * S, D), wq_ref, bq_ref)   # (B*S, D) f32
        k = project(k_ref[...].reshape(B * T, D), wk_ref, bk_ref)   # (B*T, D) f32
        v = project(v_ref[...].reshape(B * T, D), wv_ref, bv_ref)   # (B*T, D) f32

        # Fold the 1/sqrt(Dh) scale into Q (smaller than the score tensor).
        q = q * jnp.float32(scale)

        if has_mask:
            mask = mask_ref[...].astype(jnp.float32)[None, :, :]    # (1, S, T)
        elif causal:
            rows = jax.lax.broadcasted_iota(jnp.int32, (S, T), 0)
            cols = jax.lax.broadcasted_iota(jnp.int32, (S, T), 1)
            mask = jnp.where(cols <= rows, 0.0, -1e9).astype(jnp.float32)[None, :, :]
        else:
            mask = None

        # Head-major, (head, batch)-grouped layout: (G, ·, Dh).
        qh = split_heads(q, S).astype(matmul_dtype)     # (G, S, Dh)
        kh = split_heads(k, T).astype(matmul_dtype)     # (G, T, Dh)
        vh = split_heads(v, T).astype(matmul_dtype)     # (G, T, Dh)

        # All heads and all batch elements of the block in one contraction;
        # contracts the last axis of both operands (no explicit K transpose).
        scores = jnp.einsum("gsd,gtd->gst", qh, kh,
                            preferred_element_type=jnp.float32)      # (G, S, T) f32
        if mask is not None:
            scores = scores + mask
        scores = scores + 1e-10              # matches F.softmax(dot + 1e-10)

        # Numerically-stable softmax over T (kept in f32 on all chips).
        m = jnp.max(scores, axis=-1, keepdims=True)
        e = jnp.exp(scores - m)
        denom = jnp.sum(e, axis=-1, keepdims=True)
        # One reciprocal per row instead of a divide per element.
        p = e * pl.reciprocal(denom)

        yh = jnp.einsum("gst,gtd->gsd", p.astype(matmul_dtype), vh,
                        preferred_element_type=jnp.float32)          # (G, S, Dh)
        y = merge_heads(yh)                                          # (B*S, D)

        # Output (head) projection, batched over the whole block.
        out = jnp.dot(y.astype(matmul_dtype), wo_ref[...].astype(matmul_dtype),
                      preferred_element_type=jnp.float32) + bo_ref[...].astype(jnp.float32)
        o_ref[...] = out.reshape(B, S, D).astype(o_ref.dtype)

    return kernel


def _pick_batch_block(N, S, T, D, H, itemsize, max_block=8, budget_bytes=8 << 20):
    """Choose how many batch elements to fold into one grid step."""
    per_elem = (2 * (2 * S + 2 * T) * D * itemsize   # double-buffered q/k/v/out blocks
                + (2 * S + 2 * T) * D * 4            # f32 projected activations
                + 2 * H * S * T * 4)                 # f32 scores + probs
    bb = max(1, min(max_block, budget_bytes // max(per_elem, 1)))
    if N >= 2:
        bb = min(bb, max(1, N // 2))   # keep >= 2 parallel grid steps (v7x: 2 TCs)
    bb = min(bb, N)
    while N % bb:                      # must divide N
        bb -= 1
    return bb


def multi_head_attention(query, key, value, params, num_heads,
                         attn_mask=None, causal=False, batch_block=None,
                         vmem_limit_bytes=48 * 1024 * 1024):
    """Pallas implementation of MultiHeadAttentionLayer.forward (eval mode).

    query: (N, S, D), key/value: (N, T, D).
    attn_mask: optional (S, T) additive mask; or causal=True to build the
               causal mask in-kernel (no mask DMA).
    params: dict with wq, bq, wk, bk, wv, bv, wo, bo where w* are (D_in, D_out)
            (already transposed to input-major) and b* are (D,).
    """
    N, S, D = query.shape
    _, T, _ = value.shape
    assert key.shape == value.shape
    assert D % num_heads == 0
    assert not (causal and attn_mask is not None), "pass either attn_mask or causal"

    has_mask = attn_mask is not None
    # bf16 MXU operands (f32 accumulation) when inputs are bf16; f32 otherwise.
    matmul_dtype = jnp.bfloat16 if query.dtype == jnp.bfloat16 else jnp.float32

    if batch_block is None:
        batch_block = _pick_batch_block(N, S, T, D, num_heads,
                                        jnp.dtype(query.dtype).itemsize)
    B = batch_block
    assert N % B == 0
    grid = (N // B,)

    # Biases as (1, D) so they stay 2-D inside the kernel.
    bq = params["bq"].reshape(1, D)
    bk = params["bk"].reshape(1, D)
    bv = params["bv"].reshape(1, D)
    bo = params["bo"].reshape(1, D)

    kernel = _make_mha_kernel(B, S, T, D, num_heads, has_mask, causal, matmul_dtype)

    per_block = lambda i: (i, 0, 0)
    whole_2d = lambda i: (0, 0)

    in_specs = [
        pl.BlockSpec((B, S, D), per_block),    # query block
        pl.BlockSpec((B, T, D), per_block),    # key block
        pl.BlockSpec((B, T, D), per_block),    # value block
        pl.BlockSpec((D, D), whole_2d),        # Wq
        pl.BlockSpec((1, D), whole_2d),        # bq
        pl.BlockSpec((D, D), whole_2d),        # Wk
        pl.BlockSpec((1, D), whole_2d),        # bk
        pl.BlockSpec((D, D), whole_2d),        # Wv
        pl.BlockSpec((1, D), whole_2d),        # bv
        pl.BlockSpec((D, D), whole_2d),        # Wo (head_proj)
        pl.BlockSpec((1, D), whole_2d),        # bo
    ]
    args = [query, key, value,
            params["wq"], bq, params["wk"], bk, params["wv"], bv,
            params["wo"], bo]
    if has_mask:
        in_specs.append(pl.BlockSpec((S, T), whole_2d))   # arbitrary additive mask
        args.append(attn_mask.astype(jnp.float32))

    out = pl.pallas_call(
        kernel,
        out_shape=jax.ShapeDtypeStruct((N, S, D), query.dtype),
        grid_spec=pltpu.PrefetchScalarGridSpec(
            num_scalar_prefetch=0,
            grid=grid,
            in_specs=in_specs,
            out_specs=pl.BlockSpec((B, S, D), per_block),
        ),
        compiler_params=pltpu.CompilerParams(
            dimension_semantics=("parallel",),
            vmem_limit_bytes=vmem_limit_bytes),
    )(*args)
    return out


def reference_mha(query, key, value, params, num_heads, attn_mask=None):
    """Pure-JAX reference mirroring the PyTorch forward (dropout = identity)."""
    N, S, D = query.shape
    _, T, _ = value.shape
    H = num_heads
    Dh = D // H
    q = query @ params["wq"] + params["bq"]
    k = key @ params["wk"] + params["bk"]
    v = value @ params["wv"] + params["bv"]
    q = q.reshape(N, S, H, Dh).transpose(0, 2, 1, 3)
    k = k.reshape(N, T, H, Dh).transpose(0, 2, 1, 3)
    v = v.reshape(N, T, H, Dh).transpose(0, 2, 1, 3)
    dot = jnp.einsum("nhsd,nhtd->nhst", q, k) / math.sqrt(Dh)
    if attn_mask is not None:
        dot = dot + attn_mask[None, None, :, :]
    p = jax.nn.softmax(dot + 1e-10, axis=3)
    y = jnp.einsum("nhst,nhtd->nhsd", p, v)
    y = y.transpose(0, 2, 1, 3).reshape(N, S, D)
    return y @ params["wo"] + params["bo"]


if __name__ == "__main__":
    # Small shapes consistent with the module: N=2, S=T=8, D=32, H=4.
    N, S, T, D, H = 2, 8, 8, 32, 4

    key0 = jax.random.PRNGKey(0)
    keys = jax.random.split(key0, 12)

    # Deterministic synthetic parameters (Linear: x @ W + b, W is (D_in, D_out)).
    scale = 1.0 / math.sqrt(D)
    params = {
        "wq": jax.random.uniform(keys[0], (D, D), jnp.float32, -scale, scale),
        "bq": jax.random.uniform(keys[1], (D,), jnp.float32, -scale, scale),
        "wk": jax.random.uniform(keys[2], (D, D), jnp.float32, -scale, scale),
        "bk": jax.random.uniform(keys[3], (D,), jnp.float32, -scale, scale),
        "wv": jax.random.uniform(keys[4], (D, D), jnp.float32, -scale, scale),
        "bv": jax.random.uniform(keys[5], (D,), jnp.float32, -scale, scale),
        "wo": jax.random.uniform(keys[6], (D, D), jnp.float32, -scale, scale),
        "bo": jax.random.uniform(keys[7], (D,), jnp.float32, -scale, scale),
    }

    query = jax.random.normal(keys[8], (N, S, D), jnp.float32)
    kv_key = jax.random.normal(keys[9], (N, T, D), jnp.float32)
    value = jax.random.normal(keys[10], (N, T, D), jnp.float32)

    causal_mask = jnp.where(
        jnp.tril(jnp.ones((S, T), dtype=bool)), 0.0, -1e9).astype(jnp.float32)

    # 1) causal mask generated in-kernel (no mask DMA).
    out_c = jax.block_until_ready(
        multi_head_attention(query, kv_key, value, params, H, causal=True))
    ref_c = reference_mha(query, kv_key, value, params, H, causal_mask)
    assert out_c.shape == (N, S, D)
    assert jnp.allclose(out_c, ref_c, atol=1e-4, rtol=1e-4), "causal path mismatch"

    # 2) arbitrary additive mask passed as an array (module's attn_mask path).
    rand_mask = (0.5 * jax.random.normal(keys[11], (S, T))).astype(jnp.float32)
    out_m = jax.block_until_ready(
        multi_head_attention(query, kv_key, value, params, H, attn_mask=rand_mask))
    ref_m = reference_mha(query, kv_key, value, params, H, rand_mask)
    assert jnp.allclose(out_m, ref_m, atol=1e-4, rtol=1e-4), "mask path mismatch"

    # 3) no mask.
    out_n = jax.block_until_ready(
        multi_head_attention(query, kv_key, value, params, H))
    ref_n = reference_mha(query, kv_key, value, params, H, None)
    assert jnp.allclose(out_n, ref_n, atol=1e-4, rtol=1e-4), "no-mask path mismatch"

    # 4) batch-block > 1 (single grid step covering the whole batch).
    out_b = jax.block_until_ready(
        multi_head_attention(query, kv_key, value, params, H,
                             causal=True, batch_block=N))
    assert jnp.allclose(out_b, ref_c, atol=1e-4, rtol=1e-4), "batched-block mismatch"

    print("KERNEL_OK")
</pallas_src>

<mosaic_0001>
module attributes {stable_mosaic.version = 11 : i64} {
  func.func @kernel(%arg0: i32, %arg1: memref<1x8x32xf32, #tpu.memory_space<vmem>>, %arg2: memref<1x8x32xf32, #tpu.memory_space<vmem>>, %arg3: memref<1x8x32xf32, #tpu.memory_space<vmem>>, %arg4: memref<32x32xf32, #tpu.memory_space<vmem>>, %arg5: memref<1x32xf32, #tpu.memory_space<vmem>>, %arg6: memref<32x32xf32, #tpu.memory_space<vmem>>, %arg7: memref<1x32xf32, #tpu.memory_space<vmem>>, %arg8: memref<32x32xf32, #tpu.memory_space<vmem>>, %arg9: memref<1x32xf32, #tpu.memory_space<vmem>>, %arg10: memref<32x32xf32, #tpu.memory_space<vmem>>, %arg11: memref<1x32xf32, #tpu.memory_space<vmem>>, %arg12: memref<1x8x32xf32, #tpu.memory_space<vmem>>) attributes {dimension_semantics = [#tpu.dimension_semantics<parallel>], iteration_bounds = array<i64: 2>, scalar_prefetch = 0 : i64, scratch_operands = 0 : i64, tpu.core_type = #tpu.core_type<tc>, window_params = [{transform_indices = @transform_0, window_bounds = array<i64: 1, 8, 32>}, {transform_indices = @transform_1, window_bounds = array<i64: 1, 8, 32>}, {transform_indices = @transform_2, window_bounds = array<i64: 1, 8, 32>}, {pipeline_mode = #tpu.pipeline_mode<synchronous>, transform_indices = @transform_3, window_bounds = array<i64: 32, 32>}, {pipeline_mode = #tpu.pipeline_mode<synchronous>, transform_indices = @transform_4, window_bounds = array<i64: 1, 32>}, {pipeline_mode = #tpu.pipeline_mode<synchronous>, transform_indices = @transform_5, window_bounds = array<i64: 32, 32>}, {pipeline_mode = #tpu.pipeline_mode<synchronous>, transform_indices = @transform_6, window_bounds = array<i64: 1, 32>}, {pipeline_mode = #tpu.pipeline_mode<synchronous>, transform_indices = @transform_7, window_bounds = array<i64: 32, 32>}, {pipeline_mode = #tpu.pipeline_mode<synchronous>, transform_indices = @transform_8, window_bounds = array<i64: 1, 32>}, {pipeline_mode = #tpu.pipeline_mode<synchronous>, transform_indices = @transform_9, window_bounds = array<i64: 32, 32>}, {pipeline_mode = #tpu.pipeline_mode<synchronous>, transform_indices = @transform_10, window_bounds = array<i64: 1, 32>}, {transform_indices = @transform_11, window_bounds = array<i64: 1, 8, 32>}]} {
    %c0 = arith.constant 0 : index
    %c0_0 = arith.constant 0 : index
    %c0_1 = arith.constant 0 : index
    %0 = vector.load %arg1[%c0, %c0_0, %c0_1] : memref<1x8x32xf32, #tpu.memory_space<vmem>>, vector<1x8x32xf32>
    %1 = vector.shape_cast %0 : vector<1x8x32xf32> to vector<8x32xf32>
    %c0_2 = arith.constant 0 : index
    %c0_3 = arith.constant 0 : index
    %2 = vector.load %arg4[%c0_2, %c0_3] : memref<32x32xf32, #tpu.memory_space<vmem>>, vector<32x32xf32>
    %cst = arith.constant dense<0.000000e+00> : vector<8x32xf32>
    %3 = tpu.matmul %1, %2, %cst {dimension_numbers = #tpu.dot_dimension_numbers<[1], [0], [0], [1], [0, 0, 1, 1], [], []>} : vector<8x32xf32>, vector<32x32xf32>, vector<8x32xf32> -> vector<8x32xf32>
    %c0_4 = arith.constant 0 : index
    %c0_5 = arith.constant 0 : index
    %4 = vector.load %arg5[%c0_4, %c0_5] : memref<1x32xf32, #tpu.memory_space<vmem>>, vector<1x32xf32>
    %5 = vector.broadcast %4 : vector<1x32xf32> to vector<8x32xf32>
    %6 = arith.addf %3, %5 : vector<8x32xf32>
    %c0_6 = arith.constant 0 : index
    %c0_7 = arith.constant 0 : index
    %c0_8 = arith.constant 0 : index
    %7 = vector.load %arg2[%c0_6, %c0_7, %c0_8] : memref<1x8x32xf32, #tpu.memory_space<vmem>>, vector<1x8x32xf32>
    %8 = vector.shape_cast %7 : vector<1x8x32xf32> to vector<8x32xf32>
    %c0_9 = arith.constant 0 : index
    %c0_10 = arith.constant 0 : index
    %9 = vector.load %arg6[%c0_9, %c0_10] : memref<32x32xf32, #tpu.memory_space<vmem>>, vector<32x32xf32>
    %cst_11 = arith.constant dense<0.000000e+00> : vector<8x32xf32>
    %10 = tpu.matmul %8, %9, %cst_11 {dimension_numbers = #tpu.dot_dimension_numbers<[1], [0], [0], [1], [0, 0, 1, 1], [], []>} : vector<8x32xf32>, vector<32x32xf32>, vector<8x32xf32> -> vector<8x32xf32>
    %c0_12 = arith.constant 0 : index
    %c0_13 = arith.constant 0 : index
    %11 = vector.load %arg7[%c0_12, %c0_13] : memref<1x32xf32, #tpu.memory_space<vmem>>, vector<1x32xf32>
    %12 = vector.broadcast %11 : vector<1x32xf32> to vector<8x32xf32>
    %13 = arith.addf %10, %12 : vector<8x32xf32>
    %c0_14 = arith.constant 0 : index
    %c0_15 = arith.constant 0 : index
    %c0_16 = arith.constant 0 : index
    %14 = vector.load %arg3[%c0_14, %c0_15, %c0_16] : memref<1x8x32xf32, #tpu.memory_space<vmem>>, vector<1x8x32xf32>
    %15 = vector.shape_cast %14 : vector<1x8x32xf32> to vector<8x32xf32>
    %c0_17 = arith.constant 0 : index
    %c0_18 = arith.constant 0 : index
    %16 = vector.load %arg8[%c0_17, %c0_18] : memref<32x32xf32, #tpu.memory_space<vmem>>, vector<32x32xf32>
    %cst_19 = arith.constant dense<0.000000e+00> : vector<8x32xf32>
    %17 = tpu.matmul %15, %16, %cst_19 {dimension_numbers = #tpu.dot_dimension_numbers<[1], [0], [0], [1], [0, 0, 1, 1], [], []>} : vector<8x32xf32>, vector<32x32xf32>, vector<8x32xf32> -> vector<8x32xf32>
    %c0_20 = arith.constant 0 : index
    %c0_21 = arith.constant 0 : index
    %18 = vector.load %arg9[%c0_20, %c0_21] : memref<1x32xf32, #tpu.memory_space<vmem>>, vector<1x32xf32>
    %19 = vector.broadcast %18 : vector<1x32xf32> to vector<8x32xf32>
    %20 = arith.addf %17, %19 : vector<8x32xf32>
    %cst_22 = arith.constant 0.353553385 : f32
    %21 = vector.broadcast %cst_22 : f32 to vector<8x32xf32>
    %22 = arith.mulf %6, %21 : vector<8x32xf32>
    %23 = tpu.iota {dimensions = array<i32: 0>} : vector<8x8xi32>
    %24 = tpu.iota {dimensions = array<i32: 1>} : vector<8x8xi32>
    %25 = arith.cmpi sle, %24, %23 : vector<8x8xi32>
    %cst_23 = arith.constant 0.000000e+00 : f32
    %cst_24 = arith.constant -1.000000e+09 : f32
    %26 = vector.broadcast %cst_23 : f32 to vector<8x8xf32>
    %27 = vector.broadcast %cst_24 : f32 to vector<8x8xf32>
    %28 = arith.select %25, %26, %27 : vector<8x8xi1>, vector<8x8xf32>
    %29 = vector.shape_cast %28 : vector<8x8xf32> to vector<1x8x8xf32>
    %30 = vector.shape_cast %22 : vector<8x32xf32> to vector<8x4x8xf32>
    %31 = tpu.transpose %30, [1, 0, 2] : vector<8x4x8xf32> -> vector<4x8x8xf32>
    %32 = vector.shape_cast %13 : vector<8x32xf32> to vector<8x4x8xf32>
    %33 = tpu.transpose %32, [1, 0, 2] : vector<8x4x8xf32> -> vector<4x8x8xf32>
    %34 = vector.shape_cast %20 : vector<8x32xf32> to vector<8x4x8xf32>
    %35 = tpu.transpose %34, [1, 0, 2] : vector<8x4x8xf32> -> vector<4x8x8xf32>
    "tpu.trace_start"() <{level = 10 : i32, message = "gsd,gtd->gst"}> : () -> ()
    %cst_25 = arith.constant dense<0.000000e+00> : vector<4x8x8xf32>
    %36 = tpu.matmul %31, %33, %cst_25 {dimension_numbers = #tpu.dot_dimension_numbers<[2], [2], [1], [1], [0, 0, 0, 1, 1, 1], [0], [0]>} : vector<4x8x8xf32>, vector<4x8x8xf32>, vector<4x8x8xf32> -> vector<4x8x8xf32>
    "tpu.trace_stop"() : () -> ()
    %37 = vector.broadcast %29 : vector<1x8x8xf32> to vector<4x8x8xf32>
    %38 = arith.addf %36, %37 : vector<4x8x8xf32>
    %cst_26 = arith.constant 1.000000e-10 : f32
    %39 = vector.broadcast %cst_26 : f32 to vector<4x8x8xf32>
    %40 = arith.addf %38, %39 : vector<4x8x8xf32>
    %cst_27 = arith.constant dense<0xFF800000> : vector<4x8xf32>
    %41 = vector.multi_reduction <maximumf>, %40, %cst_27 [2] : vector<4x8x8xf32> to vector<4x8xf32>
    %42 = vector.shape_cast %41 : vector<4x8xf32> to vector<4x8x1xf32>
    %43 = vector.broadcast %42 : vector<4x8x1xf32> to vector<4x8x8xf32>
    %44 = arith.subf %40, %43 : vector<4x8x8xf32>
    %45 = math.exp %44 : vector<4x8x8xf32>
    %cst_28 = arith.constant dense<0.000000e+00> : vector<4x8xf32>
    %46 = vector.multi_reduction <add>, %45, %cst_28 [2] : vector<4x8x8xf32> to vector<4x8xf32>
    %47 = vector.shape_cast %46 : vector<4x8xf32> to vector<4x8x1xf32>
    %48 = tpu.reciprocal %47 : vector<4x8x1xf32> -> vector<4x8x1xf32>
    %49 = vector.broadcast %48 : vector<4x8x1xf32> to vector<4x8x8xf32>
    %50 = arith.mulf %45, %49 : vector<4x8x8xf32>
    "tpu.trace_start"() <{level = 10 : i32, message = "gst,gtd->gsd"}> : () -> ()
    %cst_29 = arith.constant dense<0.000000e+00> : vector<4x8x8xf32>
    %51 = tpu.matmul %50, %35, %cst_29 {dimension_numbers = #tpu.dot_dimension_numbers<[2], [1], [1], [2], [0, 0, 0, 1, 1, 2], [0], [0]>} : vector<4x8x8xf32>, vector<4x8x8xf32>, vector<4x8x8xf32> -> vector<4x8x8xf32>
    "tpu.trace_stop"() : () -> ()
    %52 = tpu.transpose %51, [1, 0, 2] : vector<4x8x8xf32> -> vector<8x4x8xf32>
    %53 = vector.shape_cast %52 : vector<8x4x8xf32> to vector<8x32xf32>
    %c0_30 = arith.constant 0 : index
    %c0_31 = arith.constant 0 : index
    %54 = vector.load %arg10[%c0_30, %c0_31] : memref<32x32xf32, #tpu.memory_space<vmem>>, vector<32x32xf32>
    %cst_32 = arith.constant dense<0.000000e+00> : vector<8x32xf32>
    %55 = tpu.matmul %53, %54, %cst_32 {dimension_numbers = #tpu.dot_dimension_numbers<[1], [0], [0], [1], [0, 0, 1, 1], [], []>} : vector<8x32xf32>, vector<32x32xf32>, vector<8x32xf32> -> vector<8x32xf32>
    %c0_33 = arith.constant 0 : index
    %c0_34 = arith.constant 0 : index
    %56 = vector.load %arg11[%c0_33, %c0_34] : memref<1x32xf32, #tpu.memory_space<vmem>>, vector<1x32xf32>
    %57 = vector.broadcast %56 : vector<1x32xf32> to vector<8x32xf32>
    %58 = arith.addf %55, %57 : vector<8x32xf32>
    %59 = vector.shape_cast %58 : vector<8x32xf32> to vector<1x8x32xf32>
    %c0_35 = arith.constant 0 : index
    %c0_36 = arith.constant 0 : index
    %c0_37 = arith.constant 0 : index
    %60 = vector.load %arg12[%c0_35, %c0_36, %c0_37] : memref<1x8x32xf32, #tpu.memory_space<vmem>>, vector<1x8x32xf32>
    tpu.vector_store %arg12[%c0_35, %c0_36, %c0_37], %59 {strides = array<i32>} : memref<1x8x32xf32, #tpu.memory_space<vmem>>, vector<1x8x32xf32>,
    return
  }
  func.func @transform_0(%arg0: i32) -> (i32, i32, i32) {
    %c0_i32 = arith.constant 0 : i32
    %c0_i32_0 = arith.constant 0 : i32
    %c0_i32_1 = arith.constant 0 : i32
    return %arg0, %c0_i32, %c0_i32_0 : i32, i32, i32
  }
  func.func @transform_1(%arg0: i32) -> (i32, i32, i32) {
    %c0_i32 = arith.constant 0 : i32
    %c0_i32_0 = arith.constant 0 : i32
    %c0_i32_1 = arith.constant 0 : i32
    return %arg0, %c0_i32, %c0_i32_0 : i32, i32, i32
  }
  func.func @transform_2(%arg0: i32) -> (i32, i32, i32) {
    %c0_i32 = arith.constant 0 : i32
    %c0_i32_0 = arith.constant 0 : i32
    %c0_i32_1 = arith.constant 0 : i32
    return %arg0, %c0_i32, %c0_i32_0 : i32, i32, i32
  }
  func.func @transform_3(%arg0: i32) -> (i32, i32) {
    %c0_i32 = arith.constant 0 : i32
    %c0_i32_0 = arith.constant 0 : i32
    %c0_i32_1 = arith.constant 0 : i32
    return %c0_i32, %c0_i32_0 : i32, i32
  }
  func.func @transform_4(%arg0: i32) -> (i32, i32) {
    %c0_i32 = arith.constant 0 : i32
    %c0_i32_0 = arith.constant 0 : i32
    %c0_i32_1 = arith.constant 0 : i32
    return %c0_i32, %c0_i32_0 : i32, i32
  }
  func.func @transform_5(%arg0: i32) -> (i32, i32) {
    %c0_i32 = arith.constant 0 : i32
    %c0_i32_0 = arith.constant 0 : i32
    %c0_i32_1 = arith.constant 0 : i32
    return %c0_i32, %c0_i32_0 : i32, i32
  }
  func.func @transform_6(%arg0: i32) -> (i32, i32) {
    %c0_i32 = arith.constant 0 : i32
    %c0_i32_0 = arith.constant 0 : i32
    %c0_i32_1 = arith.constant 0 : i32
    return %c0_i32, %c0_i32_0 : i32, i32
  }
  func.func @transform_7(%arg0: i32) -> (i32, i32) {
    %c0_i32 = arith.constant 0 : i32
    %c0_i32_0 = arith.constant 0 : i32
    %c0_i32_1 = arith.constant 0 : i32
    return %c0_i32, %c0_i32_0 : i32, i32
  }
  func.func @transform_8(%arg0: i32) -> (i32, i32) {
    %c0_i32 = arith.constant 0 : i32
    %c0_i32_0 = arith.constant 0 : i32
    %c0_i32_1 = arith.constant 0 : i32
    return %c0_i32, %c0_i32_0 : i32, i32
  }
  func.func @transform_9(%arg0: i32) -> (i32, i32) {
    %c0_i32 = arith.constant 0 : i32
    %c0_i32_0 = arith.constant 0 : i32
    %c0_i32_1 = arith.constant 0 : i32
    return %c0_i32, %c0_i32_0 : i32, i32
  }
  func.func @transform_10(%arg0: i32) -> (i32, i32) {
    %c0_i32 = arith.constant 0 : i32
    %c0_i32_0 = arith.constant 0 : i32
    %c0_i32_1 = arith.constant 0 : i32
    return %c0_i32, %c0_i32_0 : i32, i32
  }
  func.func @transform_11(%arg0: i32) -> (i32, i32, i32) {
    %c0_i32 = arith.constant 0 : i32
    %c0_i32_0 = arith.constant 0 : i32
    %c0_i32_1 = arith.constant 0 : i32
    return %arg0, %c0_i32, %c0_i32_0 : i32, i32, i32
  }
}

</mosaic_0001>

<llo_original>
// kernel: tpu_custom_call.1
$region0: #{tpu_custom_call.1}
  #allocation0 [shape = 'u32[]', space=smem, size = 0x4, offset = 0x4, fixed_abs, tag = 'smem constant byte address 0x4 - core index']
  #allocation1 [shape = 'u32[144,128]{1,0:T(1,128)}', space=vmem, size = 0x12000, scoped, tag = 'internal scratch']
  %s0 = inlined_call_operand.hbm [shape: f32[2,8,32], index: 0, kind: input, shape index: {}]
  %s1 = inlined_call_operand.hbm [shape: f32[2,8,32], index: 1, kind: input, shape index: {}]
  %s2 = inlined_call_operand.hbm [shape: f32[2,8,32], index: 2, kind: input, shape index: {}]
  %s3 = inlined_call_operand.hbm [shape: f32[32,32], index: 3, kind: input, shape index: {}]
  %s4 = inlined_call_operand.vmem [shape: f32[1,32], index: 4, kind: input, shape index: {}]
  %s5 = inlined_call_operand.hbm [shape: f32[32,32], index: 5, kind: input, shape index: {}]
  %s6 = inlined_call_operand.vmem [shape: f32[1,32], index: 6, kind: input, shape index: {}]
  %s7 = inlined_call_operand.hbm [shape: f32[32,32], index: 7, kind: input, shape index: {}]
  %s8 = inlined_call_operand.hbm [shape: f32[1,32], index: 8, kind: input, shape index: {}]
  %s9 = inlined_call_operand.vmem [shape: f32[32,32], index: 9, kind: input, shape index: {}]
  %s10 = inlined_call_operand.vmem [shape: f32[1,32], index: 10, kind: input, shape index: {}]
  %s11 = inlined_call_operand.hbm [shape: f32[2,8,32], index: 11, kind: output, shape index: {}]
  %s12 = sld [smem:[#allocation0]]
  $region105: #{tpu_custom_call.1} parent=0
    _
  %s14 = ssub.s32 1, %s12
  %s15 = scalar_select 0, %s14, %s12
  $region1: #{tpu_custom_call.1} parent=0
    #allocation2 [shape = 'u8[8192]{0}', space=vmem, size = 0x2000, scoped, tag = 'input window, operand 0']
    #allocation3 [shape = 's32[2]{0}', space=sflag, size = 0x8, scoped, tag = 'scoped memory for tpu_custom_call.1']
    #allocation4 [shape = 's32[2]{0}', space=sflag, size = 0x8, scoped, tag = 'scoped memory for tpu_custom_call.1']
    #allocation5 [shape = 'u8[8192]{0}', space=vmem, size = 0x2000, scoped, tag = 'input window, operand 1']
    #allocation6 [shape = 's32[2]{0}', space=sflag, size = 0x8, scoped, tag = 'scoped memory for tpu_custom_call.1']
    #allocation7 [shape = 'u8[8192]{0}', space=vmem, size = 0x2000, scoped, tag = 'input window, operand 2']
    #allocation8 [shape = 'u8[16384]{0}', space=vmem, size = 0x4000, scoped, tag = 'input window, operand 3, single buffered']
    #allocation9 [shape = 's32[1]{0}', space=sflag, size = 0x4, scoped, tag = 'scoped memory for tpu_custom_call.1']
    #allocation10 [shape = 'u8[16384]{0}', space=vmem, size = 0x4000, scoped, tag = 'input window, operand 5, single buffered']
    #allocation11 [shape = 'u8[16384]{0}', space=vmem, size = 0x4000, scoped, tag = 'input window, operand 7, single buffered']
    #allocation12 [shape = 's32[1]{0}', space=sflag, size = 0x4, scoped, tag = 'scoped memory for tpu_custom_call.1']
    #allocation13 [shape = 'u8[512]{0}', space=vmem, size = 0x400, scoped, tag = 'input window, operand 8, single buffered']
    #allocation14 [shape = 'u8[8192]{0}', space=vmem, size = 0x2000, scoped, tag = 'output window, operand 0']
    %16 = vsyncpa [#allocation3], 0
    %s17 = scalar_lea.sflag [#allocation3], 1
    %18 = vsyncpa %s17, 0
    %19 = vsyncpa [#allocation6], 0
    %s20 = scalar_lea.sflag [#allocation6], 1
    %21 = vsyncpa %s20, 0
    %22 = vsyncpa [#allocation9], 0
    %23 = vsyncpa [#allocation12], 0
    %24 = vsyncpa [#allocation4], 0
    %s25 = scalar_lea.sflag [#allocation4], 1
    %26 = vsyncpa %s25, 0
    loop: start=0, step=1, limit=4
    $region2: #{tpu_custom_call.1} parent=1 // loop_pre_header
      _
    $region3: #{tpu_custom_call.1} parent=1 // loop_header
      %s28 = sphi 0, %s32
      %p29 = scmp.ge.s32.totalorder %s28, 4
      %s38 = sphi 0, %s40
      %s41 = sphi 0, %s38
      %s42 = sphi 0, %s41
      %s58 = sphi 0, %s42
      %s64 = sphi 0, %s66
      %s67 = sphi 0, %s64
      %s68 = sphi 0, %s67
      %s84 = sphi 0, %s68
      %s90 = sphi 0, %s92
      %s93 = sphi 0, %s90
      %s94 = sphi 0, %s93
      %s110 = sphi 0, %s94
      %s114 = sphi 0, %s114
      %s116 = sphi 0, %s114
      %s117 = sphi 0, %s116
      %s131 = sphi 0, %s117
      %s135 = sphi 0, %s135
      %s137 = sphi 0, %s135
      %s138 = sphi 0, %s137
      %s152 = sphi 0, %s138
      %s156 = sphi 0, %s156
      %s158 = sphi 0, %s156
      %s159 = sphi 0, %s158
      %s173 = sphi 0, %s159
      %s177 = sphi 0, %s177
      %s179 = sphi 0, %s177
      %s180 = sphi 0, %s179
      %s194 = sphi 0, %s180
      %s198 = sphi 0, %s198
      %s200 = sphi 0, %s198
      %s201 = sphi 0, %s200
      %s215 = sphi 0, %s201
      %s219 = sphi 0, %s219
      %s221 = sphi 0, %s219
      %s222 = sphi 0, %s221
      %s236 = sphi 0, %s222
      %s240 = sphi 0, %s240
      %s242 = sphi 0, %s240
      %s243 = sphi 0, %s242
      %s257 = sphi 0, %s243
      %s261 = sphi 0, %s261
      %s263 = sphi 0, %s261
      %s264 = sphi 0, %s263
      %s278 = sphi 0, %s264
      %s284 = sphi 0, %s286
      %s287 = sphi 0, %s284
      %s288 = sphi 0, %s287
      %s304 = sphi 0, %s288
    $region4: #{tpu_custom_call.1} parent=1 // loop_header_branch
      %31 = sbr.rel (%p29) target = $region8
    $region5: #{tpu_custom_call.1} parent=1 // loop_body
      %s33 = ssub.s32 %s28, 1
      %s34 = ssub.s32 %s28, 2
      %s35 = sadd.s32 %s28, 1
      %s36 = ssub.s32 %s28, %s35
      %p37 = scmp.eq.s32.totalorder %s36, 0
      %s39 = sadd.s32 %s38, 1
      %s40 = scalar_select %p37, %s38, %s39
      %p43 = pneg %p37
      %p44 = scmp.eq.s32.totalorder %s28, 1
      %p45 = por %p43, %p44
      %p46 = scmp.ne.s32.totalorder %s38, %s41
      %p47 = scmp.eq.s32.totalorder %s28, 0
      %p48 = por %p46, %p47
      %p49 = scmp.ne.s32.totalorder %s38, %s41
      %p50 = scmp.eq.s32.totalorder %s33, 1
      %p51 = por %p49, %p50
      %p52 = scmp.ne.s32.totalorder %s41, %s42
      %p53 = scmp.eq.s32.totalorder %s33, 0
      %p54 = por %p52, %p53
      %p55 = scmp.ne.s32.totalorder %s41, %s42
      %p56 = scmp.eq.s32.totalorder %s34, 1
      %p57 = por %p55, %p56
      %p59 = scmp.ne.s32.totalorder %s42, %s58
      %p60 = scmp.eq.s32.totalorder %s34, 0
      %p61 = por %p59, %p60
      %s62 = ssub.s32 %s28, %s35
      %p63 = scmp.eq.s32.totalorder %s62, 0
      %s65 = sadd.s32 %s64, 1
      %s66 = scalar_select %p63, %s64, %s65
      %p69 = pneg %p63
      %p70 = scmp.eq.s32.totalorder %s28, 1
      %p71 = por %p69, %p70
      %p72 = scmp.ne.s32.totalorder %s64, %s67
      %p73 = scmp.eq.s32.totalorder %s28, 0
      %p74 = por %p72, %p73
      %p75 = scmp.ne.s32.totalorder %s64, %s67
      %p76 = scmp.eq.s32.totalorder %s33, 1
      %p77 = por %p75, %p76
      %p78 = scmp.ne.s32.totalorder %s67, %s68
      %p79 = scmp.eq.s32.totalorder %s33, 0
      %p80 = por %p78, %p79
      %p81 = scmp.ne.s32.totalorder %s67, %s68
      %p82 = scmp.eq.s32.totalorder %s34, 1
      %p83 = por %p81, %p82
      %p85 = scmp.ne.s32.totalorder %s68, %s84
      %p86 = scmp.eq.s32.totalorder %s34, 0
      %p87 = por %p85, %p86
      %s88 = ssub.s32 %s28, %s35
      %p89 = scmp.eq.s32.totalorder %s88, 0
      %s91 = sadd.s32 %s90, 1
      %s92 = scalar_select %p89, %s90, %s91
      %p95 = pneg %p89
      %p96 = scmp.eq.s32.totalorder %s28, 1
      %p97 = por %p95, %p96
      %p98 = scmp.ne.s32.totalorder %s90, %s93
      %p99 = scmp.eq.s32.totalorder %s28, 0
      %p100 = por %p98, %p99
      %p101 = scmp.ne.s32.totalorder %s90, %s93
      %p102 = scmp.eq.s32.totalorder %s33, 1
      %p103 = por %p101, %p102
      %p104 = scmp.ne.s32.totalorder %s93, %s94
      %p105 = scmp.eq.s32.totalorder %s33, 0
      %p106 = por %p104, %p105
      %p107 = scmp.ne.s32.totalorder %s93, %s94
      %p108 = scmp.eq.s32.totalorder %s34, 1
      %p109 = por %p107, %p108
      %p111 = scmp.ne.s32.totalorder %s94, %s110
      %p112 = scmp.eq.s32.totalorder %s34, 0
      %p113 = por %p111, %p112
      %s115 = sadd.s32 %s114, 1
      %p118 = scmp.eq.s32.totalorder %s28, 1
      %p119 = scmp.ne.s32.totalorder %s114, %s116
      %p120 = scmp.eq.s32.totalorder %s28, 0
      %p121 = por %p119, %p120
      %p122 = scmp.ne.s32.totalorder %s114, %s116
      %p123 = scmp.eq.s32.totalorder %s33, 1
      %p124 = por %p122, %p123
      %p125 = scmp.ne.s32.totalorder %s116, %s117
      %p126 = scmp.eq.s32.totalorder %s33, 0
      %p127 = por %p125, %p126
      %p128 = scmp.ne.s32.totalorder %s116, %s117
      %p129 = scmp.eq.s32.totalorder %s34, 1
      %p130 = por %p128, %p129
      %p132 = scmp.ne.s32.totalorder %s117, %s131
      %p133 = scmp.eq.s32.totalorder %s34, 0
      %p134 = por %p132, %p133
      %s136 = sadd.s32 %s135, 1
      %p139 = scmp.eq.s32.totalorder %s28, 1
      %p140 = scmp.ne.s32.totalorder %s135, %s137
      %p141 = scmp.eq.s32.totalorder %s28, 0
      %p142 = por %p140, %p141
      %p143 = scmp.ne.s32.totalorder %s135, %s137
      %p144 = scmp.eq.s32.totalorder %s33, 1
      %p145 = por %p143, %p144
      %p146 = scmp.ne.s32.totalorder %s137, %s138
      %p147 = scmp.eq.s32.totalorder %s33, 0
      %p148 = por %p146, %p147
      %p149 = scmp.ne.s32.totalorder %s137, %s138
      %p150 = scmp.eq.s32.totalorder %s34, 1
      %p151 = por %p149, %p150
      %p153 = scmp.ne.s32.totalorder %s138, %s152
      %p154 = scmp.eq.s32.totalorder %s34, 0
      %p155 = por %p153, %p154
      %s157 = sadd.s32 %s156, 1
      %p160 = scmp.eq.s32.totalorder %s28, 1
      %p161 = scmp.ne.s32.totalorder %s156, %s158
      %p162 = scmp.eq.s32.totalorder %s28, 0
      %p163 = por %p161, %p162
      %p164 = scmp.ne.s32.totalorder %s156, %s158
      %p165 = scmp.eq.s32.totalorder %s33, 1
      %p166 = por %p164, %p165
      %p167 = scmp.ne.s32.totalorder %s158, %s159
      %p168 = scmp.eq.s32.totalorder %s33, 0
      %p169 = por %p167, %p168
      %p170 = scmp.ne.s32.totalorder %s158, %s159
      %p171 = scmp.eq.s32.totalorder %s34, 1
      %p172 = por %p170, %p171
      %p174 = scmp.ne.s32.totalorder %s159, %s173
      %p175 = scmp.eq.s32.totalorder %s34, 0
      %p176 = por %p174, %p175
      %s178 = sadd.s32 %s177, 1
      %p181 = scmp.eq.s32.totalorder %s28, 1
      %p182 = scmp.ne.s32.totalorder %s177, %s179
      %p183 = scmp.eq.s32.totalorder %s28, 0
      %p184 = por %p182, %p183
      %p185 = scmp.ne.s32.totalorder %s177, %s179
      %p186 = scmp.eq.s32.totalorder %s33, 1
      %p187 = por %p185, %p186
      %p188 = scmp.ne.s32.totalorder %s179, %s180
      %p189 = scmp.eq.s32.totalorder %s33, 0
      %p190 = por %p188, %p189
      %p191 = scmp.ne.s32.totalorder %s179, %s180
      %p192 = scmp.eq.s32.totalorder %s34, 1
      %p193 = por %p191, %p192
      %p195 = scmp.ne.s32.totalorder %s180, %s194
      %p196 = scmp.eq.s32.totalorder %s34, 0
      %p197 = por %p195, %p196
      %s199 = sadd.s32 %s198, 1
      %p202 = scmp.eq.s32.totalorder %s28, 1
      %p203 = scmp.ne.s32.totalorder %s198, %s200
      %p204 = scmp.eq.s32.totalorder %s28, 0
      %p205 = por %p203, %p204
      %p206 = scmp.ne.s32.totalorder %s198, %s200
      %p207 = scmp.eq.s32.totalorder %s33, 1
      %p208 = por %p206, %p207
      %p209 = scmp.ne.s32.totalorder %s200, %s201
      %p210 = scmp.eq.s32.totalorder %s33, 0
      %p211 = por %p209, %p210
      %p212 = scmp.ne.s32.totalorder %s200, %s201
      %p213 = scmp.eq.s32.totalorder %s34, 1
      %p214 = por %p212, %p213
      %p216 = scmp.ne.s32.totalorder %s201, %s215
      %p217 = scmp.eq.s32.totalorder %s34, 0
      %p218 = por %p216, %p217
      %s220 = sadd.s32 %s219, 1
      %p223 = scmp.eq.s32.totalorder %s28, 1
      %p224 = scmp.ne.s32.totalorder %s219, %s221
      %p225 = scmp.eq.s32.totalorder %s28, 0
      %p226 = por %p224, %p225
      %p227 = scmp.ne.s32.totalorder %s219, %s221
      %p228 = scmp.eq.s32.totalorder %s33, 1
      %p229 = por %p227, %p228
      %p230 = scmp.ne.s32.totalorder %s221, %s222
      %p231 = scmp.eq.s32.totalorder %s33, 0
      %p232 = por %p230, %p231
      %p233 = scmp.ne.s32.totalorder %s221, %s222
      %p234 = scmp.eq.s32.totalorder %s34, 1
      %p235 = por %p233, %p234
      %p237 = scmp.ne.s32.totalorder %s222, %s236
      %p238 = scmp.eq.s32.totalorder %s34, 0
      %p239 = por %p237, %p238
      %s241 = sadd.s32 %s240, 1
      %p244 = scmp.eq.s32.totalorder %s28, 1
      %p245 = scmp.ne.s32.totalorder %s240, %s242
      %p246 = scmp.eq.s32.totalorder %s28, 0
      %p247 = por %p245, %p246
      %p248 = scmp.ne.s32.totalorder %s240, %s242
      %p249 = scmp.eq.s32.totalorder %s33, 1
      %p250 = por %p248, %p249
      %p251 = scmp.ne.s32.totalorder %s242, %s243
      %p252 = scmp.eq.s32.totalorder %s33, 0
      %p253 = por %p251, %p252
      %p254 = scmp.ne.s32.totalorder %s242, %s243
      %p255 = scmp.eq.s32.totalorder %s34, 1
      %p256 = por %p254, %p255
      %p258 = scmp.ne.s32.totalorder %s243, %s257
      %p259 = scmp.eq.s32.totalorder %s34, 0
      %p260 = por %p258, %p259
      %s262 = sadd.s32 %s261, 1
      %p265 = scmp.eq.s32.totalorder %s28, 1
      %p266 = scmp.ne.s32.totalorder %s261, %s263
      %p267 = scmp.eq.s32.totalorder %s28, 0
      %p268 = por %p266, %p267
      %p269 = scmp.ne.s32.totalorder %s261, %s263
      %p270 = scmp.eq.s32.totalorder %s33, 1
      %p271 = por %p269, %p270
      %p272 = scmp.ne.s32.totalorder %s263, %s264
      %p273 = scmp.eq.s32.totalorder %s33, 0
      %p274 = por %p272, %p273
      %p275 = scmp.ne.s32.totalorder %s263, %s264
      %p276 = scmp.eq.s32.totalorder %s34, 1
      %p277 = por %p275, %p276
      %p279 = scmp.ne.s32.totalorder %s264, %s278
      %p280 = scmp.eq.s32.totalorder %s34, 0
      %p281 = por %p279, %p280
      %s282 = ssub.s32 %s28, %s35
      %p283 = scmp.eq.s32.totalorder %s282, 0
      %s285 = sadd.s32 %s284, 1
      %s286 = scalar_select %p283, %s284, %s285
      %p289 = pneg %p283
      %p290 = scmp.eq.s32.totalorder %s28, 1
      %p291 = por %p289, %p290
      %p292 = scmp.ne.s32.totalorder %s284, %s287
      %p293 = scmp.eq.s32.totalorder %s28, 0
      %p294 = por %p292, %p293
      %p295 = scmp.ne.s32.totalorder %s284, %s287
      %p296 = scmp.eq.s32.totalorder %s33, 1
      %p297 = por %p295, %p296
      %p298 = scmp.ne.s32.totalorder %s287, %s288
      %p299 = scmp.eq.s32.totalorder %s33, 0
      %p300 = por %p298, %p299
      %p301 = scmp.ne.s32.totalorder %s287, %s288
      %p302 = scmp.eq.s32.totalorder %s34, 1
      %p303 = por %p301, %p302
      %p305 = scmp.ne.s32.totalorder %s288, %s304
      %p306 = scmp.eq.s32.totalorder %s34, 0
      %p307 = por %p305, %p306
      %p308 = scmp.le.s32.totalorder 1, %s28
      %p309 = scmp.lt.s32.totalorder %s28, 3
      %p310 = pnand %p308, %p309
      %p311 = pneg %p310
      // Predicated region
      $region9: #{tpu_custom_call.1} parent=5 // pred_check
        _
      $region10: #{tpu_custom_call.1} parent=5 // pred_check_branch
        %313 = sbr.rel (%p310) target = $region12
      $region11: #{tpu_custom_call.1} parent=5 // pred_region
        %s314 = ssub.s32 %s28, 1
        // Predicated region
        $region13: #{tpu_custom_call.1} parent=11 // pred_check
          %p315 = pneg %p127
        $region14: #{tpu_custom_call.1} parent=11 // pred_check_branch
          %317 = sbr.rel (%p315) target = $region16
        $region15: #{tpu_custom_call.1} parent=11 // pred_region
          %s319 = ssub.s32 512, 512
          %320 = vsyncadd [#allocation9], %s319
          %s321 = sshll.u32 [#allocation8], 4
          %s322 = int_to_ptr.vmem [resolvable:$true] %s321
          %327 = dma.hbm_to_vmem [thread:$0]  %s3, 512, %s322, [#allocation9], 128, 128, 8
        $region16: #{tpu_custom_call.1} parent=11 // pred_fallthru
          _
        // Predicated region
        $region17: #{tpu_custom_call.1} parent=11 // pred_check
          %p328 = pneg %p148
        $region18: #{tpu_custom_call.1} parent=11 // pred_check_branch
          %330 = sbr.rel (%p328) target = $region20
        $region19: #{tpu_custom_call.1} parent=11 // pred_region
          _
        $region20: #{tpu_custom_call.1} parent=11 // pred_fallthru
          _
        // Predicated region
        $region21: #{tpu_custom_call.1} parent=11 // pred_check
          %p331 = pneg %p169
        $region22: #{tpu_custom_call.1} parent=11 // pred_check_branch
          %333 = sbr.rel (%p331) target = $region24
        $region23: #{tpu_custom_call.1} parent=11 // pred_region
          %s335 = ssub.s32 512, 512
          %336 = vsyncadd [#allocation9], %s335
          %s337 = sshll.u32 [#allocation10], 4
          %s338 = int_to_ptr.vmem [resolvable:$true] %s337
          %343 = dma.hbm_to_vmem [thread:$0]  %s5, 512, %s338, [#allocation9], 128, 128, 8
        $region24: #{tpu_custom_call.1} parent=11 // pred_fallthru
          _
        // Predicated region
        $region25: #{tpu_custom_call.1} parent=11 // pred_check
          %p344 = pneg %p190
        $region26: #{tpu_custom_call.1} parent=11 // pred_check_branch
          %346 = sbr.rel (%p344) target = $region28
        $region27: #{tpu_custom_call.1} parent=11 // pred_region
          _
        $region28: #{tpu_custom_call.1} parent=11 // pred_fallthru
          _
        // Predicated region
        $region29: #{tpu_custom_call.1} parent=11 // pred_check
          %p347 = pneg %p211
        $region30: #{tpu_custom_call.1} parent=11 // pred_check_branch
          %349 = sbr.rel (%p347) target = $region32
        $region31: #{tpu_custom_call.1} parent=11 // pred_region
          %s351 = ssub.s32 512, 512
          %352 = vsyncadd [#allocation12], %s351
          %s353 = sshll.u32 [#allocation11], 4
          %s354 = int_to_ptr.vmem [resolvable:$true] %s353
          %359 = dma.hbm_to_vmem [thread:$0]  %s7, 512, %s354, [#allocation12], 128, 128, 8
        $region32: #{tpu_custom_call.1} parent=11 // pred_fallthru
          _
        // Predicated region
        $region33: #{tpu_custom_call.1} parent=11 // pred_check
          %p360 = pneg %p232
        $region34: #{tpu_custom_call.1} parent=11 // pred_check_branch
          %362 = sbr.rel (%p360) target = $region36
        $region35: #{tpu_custom_call.1} parent=11 // pred_region
          %s364 = ssub.s32 16, 16
          %365 = vsyncadd [#allocation12], %s364
          %s367 = sshll.u32 [#allocation13], 4
          %s368 = int_to_ptr.vmem [resolvable:$true] %s367
          %370 = dma.hbm_to_vmem [thread:$0]  %s8, 16, %s368, [#allocation12]
        $region36: #{tpu_custom_call.1} parent=11 // pred_fallthru
          _
        // Predicated region
        $region37: #{tpu_custom_call.1} parent=11 // pred_check
          %p371 = pneg %p253
        $region38: #{tpu_custom_call.1} parent=11 // pred_check_branch
          %373 = sbr.rel (%p371) target = $region40
        $region39: #{tpu_custom_call.1} parent=11 // pred_region
          _
        $region40: #{tpu_custom_call.1} parent=11 // pred_fallthru
          _
        // Predicated region
        $region41: #{tpu_custom_call.1} parent=11 // pred_check
          %p374 = pneg %p274
        $region42: #{tpu_custom_call.1} parent=11 // pred_check_branch
          %376 = sbr.rel (%p374) target = $region44
        $region43: #{tpu_custom_call.1} parent=11 // pred_region
          _
        $region44: #{tpu_custom_call.1} parent=11 // pred_fallthru
          _
      $region12: #{tpu_custom_call.1} parent=5 // pred_fallthru
        _
      %p377 = scmp.lt.s32.totalorder %s28, 2
      // Predicated region
      $region45: #{tpu_custom_call.1} parent=5 // pred_check
        %p378 = pneg %p377
      $region46: #{tpu_custom_call.1} parent=5 // pred_check_branch
        %380 = sbr.rel (%p378) target = $region48
      $region47: #{tpu_custom_call.1} parent=5 // pred_region
        // Predicated region
        $region49: #{tpu_custom_call.1} parent=47 // pred_check
          %p381 = pneg %p48
        $region50: #{tpu_custom_call.1} parent=47 // pred_check_branch
          %383 = sbr.rel (%p381) target = $region52
        $region51: #{tpu_custom_call.1} parent=47 // pred_region
          %s384 = sand.u32 %s38, 1
          %s385 = scalar_lea.sflag [#allocation3], %s384
          %s386 = sand.u32 %s38, 1
          %s387 = smul.addr %s386, 8
          %s388 = scalar_lea.vmem [#allocation2], %s387
          %s390 = ssub.s32 128, 128
          %391 = vsyncadd %s385, %s390
          %s392 = smul.addr %s28, 128
          %s393 = scalar_lea.hbm %s0, %s392
          %s395 = sshll.u32 %s388, 4
          %s396 = int_to_ptr.vmem [resolvable:$true] %s395
          %398 = dma.hbm_to_vmem [thread:$0]  %s393, 128, %s396, %s385
        $region52: #{tpu_custom_call.1} parent=47 // pred_fallthru
          _
        // Predicated region
        $region53: #{tpu_custom_call.1} parent=47 // pred_check
          %p399 = pneg %p74
        $region54: #{tpu_custom_call.1} parent=47 // pred_check_branch
          %401 = sbr.rel (%p399) target = $region56
        $region55: #{tpu_custom_call.1} parent=47 // pred_region
          %s402 = sand.u32 %s28, 1
          %s403 = scalar_lea.sflag [#allocation6], %s402
          %s404 = sand.u32 %s64, 1
          %s405 = smul.addr %s404, 8
          %s406 = scalar_lea.vmem [#allocation5], %s405
          %s408 = ssub.s32 128, 128
          %409 = vsyncadd %s403, %s408
          %s410 = smul.addr %s28, 128
          %s411 = scalar_lea.hbm %s1, %s410
          %s413 = sshll.u32 %s406, 4
          %s414 = int_to_ptr.vmem [resolvable:$true] %s413
          %416 = dma.hbm_to_vmem [thread:$0]  %s411, 128, %s414, %s403
        $region56: #{tpu_custom_call.1} parent=47 // pred_fallthru
          _
        // Predicated region
        $region57: #{tpu_custom_call.1} parent=47 // pred_check
          %p417 = pneg %p100
        $region58: #{tpu_custom_call.1} parent=47 // pred_check_branch
          %419 = sbr.rel (%p417) target = $region60
        $region59: #{tpu_custom_call.1} parent=47 // pred_region
          %s420 = sand.u32 %s28, 1
          %s421 = scalar_lea.sflag [#allocation6], %s420
          %s422 = sand.u32 %s90, 1
          %s423 = smul.addr %s422, 8
          %s424 = scalar_lea.vmem [#allocation7], %s423
          %s426 = ssub.s32 128, 128
          %427 = vsyncadd %s421, %s426
          %s428 = smul.addr %s28, 128
          %s429 = scalar_lea.hbm %s2, %s428
          %s431 = sshll.u32 %s424, 4
          %s432 = int_to_ptr.vmem [resolvable:$true] %s431
          %434 = dma.hbm_to_vmem [thread:$0]  %s429, 128, %s432, %s421
        $region60: #{tpu_custom_call.1} parent=47 // pred_fallthru
          _
      $region48: #{tpu_custom_call.1} parent=5 // pred_fallthru
        _
      %p435 = scmp.le.s32.totalorder 1, %s28
      %p436 = scmp.lt.s32.totalorder %s28, 3
      %p437 = pnand %p435, %p436
      %p438 = pneg %p437
      // Predicated region
      $region61: #{tpu_custom_call.1} parent=5 // pred_check
        _
      $region62: #{tpu_custom_call.1} parent=5 // pred_check_branch
        %440 = sbr.rel (%p437) target = $region64
      $region63: #{tpu_custom_call.1} parent=5 // pred_region
        %s441 = ssub.s32 %s28, 1
        %s442 = sand.u32 %s41, 1
        %s443 = scalar_lea.sflag [#allocation3], %s442
        %s444 = sand.u32 %s41, 1
        %s445 = smul.addr %s444, 8
        %s446 = scalar_lea.vmem [#allocation2], %s445
        // Predicated region
        $region65: #{tpu_custom_call.1} parent=63 // pred_check
          %p447 = pneg %p54
        $region66: #{tpu_custom_call.1} parent=63 // pred_check_branch
          %449 = sbr.rel (%p447) target = $region68
        $region67: #{tpu_custom_call.1} parent=63 // pred_region
          %450 = dma.done %s443, 128
        $region68: #{tpu_custom_call.1} parent=63 // pred_fallthru
          _
        %s451 = sand.u32 %s33, 1
        %s452 = scalar_lea.sflag [#allocation6], %s451
        %s453 = sand.u32 %s67, 1
        %s454 = smul.addr %s453, 8
        %s455 = scalar_lea.vmem [#allocation5], %s454
        // Predicated region
        $region69: #{tpu_custom_call.1} parent=63 // pred_check
          %p456 = pneg %p80
        $region70: #{tpu_custom_call.1} parent=63 // pred_check_branch
          %458 = sbr.rel (%p456) target = $region72
        $region71: #{tpu_custom_call.1} parent=63 // pred_region
          %459 = dma.done %s452, 128
        $region72: #{tpu_custom_call.1} parent=63 // pred_fallthru
          _
        %s460 = sand.u32 %s33, 1
        %s461 = scalar_lea.sflag [#allocation6], %s460
        %s462 = sand.u32 %s93, 1
        %s463 = smul.addr %s462, 8
        %s464 = scalar_lea.vmem [#allocation7], %s463
        // Predicated region
        $region73: #{tpu_custom_call.1} parent=63 // pred_check
          %p465 = pneg %p106
        $region74: #{tpu_custom_call.1} parent=63 // pred_check_branch
          %467 = sbr.rel (%p465) target = $region76
        $region75: #{tpu_custom_call.1} parent=63 // pred_region
          %468 = dma.done %s461, 128
        $region76: #{tpu_custom_call.1} parent=63 // pred_fallthru
          _
        // Predicated region
        $region77: #{tpu_custom_call.1} parent=63 // pred_check
          %p469 = pneg %p127
        $region78: #{tpu_custom_call.1} parent=63 // pred_check_branch
          %471 = sbr.rel (%p469) target = $region80
        $region79: #{tpu_custom_call.1} parent=63 // pred_region
          %472 = dma.done [#allocation9], 512
        $region80: #{tpu_custom_call.1} parent=63 // pred_fallthru
          _
        // Predicated region
        $region81: #{tpu_custom_call.1} parent=63 // pred_check
          %p473 = pneg %p169
        $region82: #{tpu_custom_call.1} parent=63 // pred_check_branch
          %475 = sbr.rel (%p473) target = $region84
        $region83: #{tpu_custom_call.1} parent=63 // pred_region
          %476 = dma.done [#allocation9], 512
        $region84: #{tpu_custom_call.1} parent=63 // pred_fallthru
          _
        // Predicated region
        $region85: #{tpu_custom_call.1} parent=63 // pred_check
          %p477 = pneg %p211
        $region86: #{tpu_custom_call.1} parent=63 // pred_check_branch
          %479 = sbr.rel (%p477) target = $region88
        $region87: #{tpu_custom_call.1} parent=63 // pred_region
          %480 = dma.done [#allocation12], 512
        $region88: #{tpu_custom_call.1} parent=63 // pred_fallthru
          _
        // Predicated region
        $region89: #{tpu_custom_call.1} parent=63 // pred_check
          %p481 = pneg %p232
        $region90: #{tpu_custom_call.1} parent=63 // pred_check_branch
          %483 = sbr.rel (%p481) target = $region92
        $region91: #{tpu_custom_call.1} parent=63 // pred_region
          %484 = dma.done [#allocation12], 16
        $region92: #{tpu_custom_call.1} parent=63 // pred_fallthru
          _
        %s485 = sand.u32 %s41, 1
        %s486 = scalar_lea.sflag [#allocation3], %s485
        %s487 = sand.u32 %s41, 1
        %s488 = smul.addr %s487, 8
        %s489 = scalar_lea.vmem [#allocation2], %s488
        %p490 = pneg %p54
        %p491 = pneg %p51
        %s492 = sand.u32 %s33, 1
        %s493 = scalar_lea.sflag [#allocation6], %s492
        %s494 = sand.u32 %s67, 1
        %s495 = smul.addr %s494, 8
        %s496 = scalar_lea.vmem [#allocation5], %s495
        %p497 = pneg %p80
        %p498 = pneg %p77
        %s499 = sand.u32 %s33, 1
        %s500 = scalar_lea.sflag [#allocation6], %s499
        %s501 = sand.u32 %s93, 1
        %s502 = smul.addr %s501, 8
        %s503 = scalar_lea.vmem [#allocation7], %s502
        %p504 = pneg %p106
        %p505 = pneg %p103
        %p506 = pneg %p127
        %p507 = pneg %p124
        %p508 = pneg %p148
        %p509 = pneg %p145
        %p510 = pneg %p169
        %p511 = pneg %p166
        %p512 = pneg %p190
        %p513 = pneg %p187
        %p514 = pneg %p211
        %p515 = pneg %p208
        %p516 = pneg %p232
        %p517 = pneg %p229
        %p518 = pneg %p253
        %p519 = pneg %p250
        %p520 = pneg %p274
        %p521 = pneg %p271
        %p522 = pneg %p300
        %p523 = pneg %p297
        %s524 = sand.u32 %s287, 1
        %s525 = scalar_lea.sflag [#allocation4], %s524
        %s526 = sand.u32 %s287, 1
        %s527 = smul.addr %s526, 8
        %s528 = scalar_lea.vmem [#allocation14], %s527
        %v529 = vld [vmem:[%s446] sm:$0xff]
        %v530 = vld [vmem:[#allocation8] sm:$0xff]
        %v531 = vld [vmem:[#allocation8 + $0x8] sm:$0xff]
        %v532 = vld [vmem:[#allocation8 + $0x10] sm:$0xff]
        %v533 = vld [vmem:[#allocation8 + $0x18] sm:$0xff]
        %v534 = vld [vmem:[%s4] sm:$0x1]
        %v536 = vlaneseq
        %v537 = vshrl.u32 %v536, 7
        %v538 = vsub.s32 0, %v537
        %v539 = vrot.slane %v534, %v538
        %vm541 = vcmask 261120
        %v543 = vsel %vm541, %v529, 0
        %545 = vmatprep.subr.mxu0 0.0
        %546 = vmatpush1.msra.mxu0 %v530
        %547 = vmatprep.subr.mxu0 0.0
        %548 = vmatpush1.msra.mxu0 %v531
        %549 = vmatprep.subr.mxu0 0.0
        %550 = vmatpush1.msra.mxu0 %v532
        %551 = vmatprep.subr.mxu0 0.0
        %552 = vmatpush1.msra.mxu0 %v533
        %553 = vmatprep.subr.mxu0 0.0
        %554 = vmatpush1.msra.mxu0 0.0
        %555 = vmatprep.subr.mxu0 0.0
        %556 = vmatpush1.msra.mxu0 0.0
        %557 = vmatprep.subr.mxu0 0.0
        %558 = vmatpush1.msra.mxu0 0.0
        %559 = vmatprep.subr.mxu0 0.0
        %560 = vmatpush1.msra.mxu0 0.0
        %561 = vmatprep.subr.mxu0 0.0
        %562 = vmatpush1.msra.mxu0 0.0
        %563 = vmatprep.subr.mxu0 0.0
        %564 = vmatpush1.msra.mxu0 0.0
        %565 = vmatprep.subr.mxu0 0.0
        %566 = vmatpush1.msra.mxu0 0.0
        %567 = vmatprep.subr.mxu0 0.0
        %568 = vmatpush1.msra.mxu0 0.0
        %569 = vmatprep.subr.mxu0 0.0
        %570 = vmatpush1.msra.mxu0 0.0
        %571 = vmatprep.subr.mxu0 0.0
        %572 = vmatpush1.msra.mxu0 0.0
        %573 = vmatprep.subr.mxu0 0.0
        %574 = vmatpush1.msra.mxu0 0.0
        %575 = vmatprep.subr.mxu0 0.0
        %576 = vmatpush1.msra.mxu0 0.0
        %577 = vmatprep.subr.mxu0 0.0
        %578 = vmatpush1.msra.mxu0 0.0
        %579 = vmatprep.subr.mxu0 0.0
        %580 = vmatpush1.msra.mxu0 0.0
        %581 = vmatprep.subr.mxu0 0.0
        %582 = vmatpush1.msra.mxu0 0.0
        %583 = vmatprep.subr.mxu0 0.0
        %584 = vmatpush1.msra.mxu0 0.0
        %585 = vmatprep.subr.mxu0 0.0
        %586 = vmatpush1.msra.mxu0 0.0
        %587 = vmatprep.subr.mxu0 0.0
        %588 = vmatpush1.msra.mxu0 0.0
        %589 = vmatprep.subr.mxu0 0.0
        %590 = vmatpush1.msra.mxu0 0.0
        %591 = vmatprep.subr.mxu0 0.0
        %592 = vmatpush1.msra.mxu0 0.0
        %593 = vmatprep.subr.mxu0 0.0
        %594 = vmatpush1.msra.mxu0 0.0
        %595 = vmatprep.subr.mxu0 0.0
        %596 = vmatpush1.msra.mxu0 0.0
        %597 = vmatprep.subr.mxu0 0.0
        %598 = vmatpush1.msra.mxu0 0.0
        %599 = vmatprep.subr.mxu0 0.0
        %600 = vmatpush1.msra.mxu0 0.0
        %601 = vmatprep.subr.mxu0 0.0
        %602 = vmatpush1.msra.mxu0 0.0
        %603 = vmatprep.subr.mxu0 0.0
        %604 = vmatpush1.msra.mxu0 0.0
        %605 = vmatprep.subr.mxu0 0.0
        %606 = vmatpush1.msra.mxu0 0.0
        %607 = vmatprep.subr.mxu0 0.0
        %608 = vmatpush1.msra.mxu0 0.0
        %609 = vmatprep.mubr.f32.mxu0 0.0
        %610 = vmatmul.mubr.f32.gmra.mrb[0].mxu0 %v543
        %v611 = vpop.f32.mrb[0].mxu0
        %v612 = vadd.f32 %v539, %v611
        %v613 = vpop.f32.mrb[0].mxu0
        %614 = vdwg.mxu0
        %v615 = vld [vmem:[%s455] sm:$0xff]
        %v616 = vld [vmem:[#allocation10] sm:$0xff]
        %v617 = vld [vmem:[#allocation10 + $0x8] sm:$0xff]
        %v618 = vld [vmem:[#allocation10 + $0x10] sm:$0xff]
        %v619 = vld [vmem:[#allocation10 + $0x18] sm:$0xff]
        %v620 = vld [vmem:[%s6] sm:$0x1]
        %v622 = vlaneseq
        %v623 = vshrl.u32 %v622, 7
        %v624 = vsub.s32 0, %v623
        %v625 = vrot.slane %v620, %v624
        %v628 = vsel %vm541, %v615, 0
        %630 = vmatprep.subr.mxu0 0.0
        %631 = vmatpush1.msra.mxu0 %v616
        %632 = vmatprep.subr.mxu0 0.0
        %633 = vmatpush1.msra.mxu0 %v617
        %634 = vmatprep.subr.mxu0 0.0
        %635 = vmatpush1.msra.mxu0 %v618
        %636 = vmatprep.subr.mxu0 0.0
        %637 = vmatpush1.msra.mxu0 %v619
        %638 = vmatprep.subr.mxu0 0.0
        %639 = vmatpush1.msra.mxu0 0.0
        %640 = vmatprep.subr.mxu0 0.0
        %641 = vmatpush1.msra.mxu0 0.0
        %642 = vmatprep.subr.mxu0 0.0
        %643 = vmatpush1.msra.mxu0 0.0
        %644 = vmatprep.subr.mxu0 0.0
        %645 = vmatpush1.msra.mxu0 0.0
        %646 = vmatprep.subr.mxu0 0.0
        %647 = vmatpush1.msra.mxu0 0.0
        %648 = vmatprep.subr.mxu0 0.0
        %649 = vmatpush1.msra.mxu0 0.0
        %650 = vmatprep.subr.mxu0 0.0
        %651 = vmatpush1.msra.mxu0 0.0
        %652 = vmatprep.subr.mxu0 0.0
        %653 = vmatpush1.msra.mxu0 0.0
        %654 = vmatprep.subr.mxu0 0.0
        %655 = vmatpush1.msra.mxu0 0.0
        %656 = vmatprep.subr.mxu0 0.0
        %657 = vmatpush1.msra.mxu0 0.0
        %658 = vmatprep.subr.mxu0 0.0
        %659 = vmatpush1.msra.mxu0 0.0
        %660 = vmatprep.subr.mxu0 0.0
        %661 = vmatpush1.msra.mxu0 0.0
        %662 = vmatprep.subr.mxu0 0.0
        %663 = vmatpush1.msra.mxu0 0.0
        %664 = vmatprep.subr.mxu0 0.0
        %665 = vmatpush1.msra.mxu0 0.0
        %666 = vmatprep.subr.mxu0 0.0
        %667 = vmatpush1.msra.mxu0 0.0
        %668 = vmatprep.subr.mxu0 0.0
        %669 = vmatpush1.msra.mxu0 0.0
        %670 = vmatprep.subr.mxu0 0.0
        %671 = vmatpush1.msra.mxu0 0.0
        %672 = vmatprep.subr.mxu0 0.0
        %673 = vmatpush1.msra.mxu0 0.0
        %674 = vmatprep.subr.mxu0 0.0
        %675 = vmatpush1.msra.mxu0 0.0
        %676 = vmatprep.subr.mxu0 0.0
        %677 = vmatpush1.msra.mxu0 0.0
        %678 = vmatprep.subr.mxu0 0.0
        %679 = vmatpush1.msra.mxu0 0.0
        %680 = vmatprep.subr.mxu0 0.0
        %681 = vmatpush1.msra.mxu0 0.0
        %682 = vmatprep.subr.mxu0 0.0
        %683 = vmatpush1.msra.mxu0 0.0
        %684 = vmatprep.subr.mxu0 0.0
        %685 = vmatpush1.msra.mxu0 0.0
        %686 = vmatprep.subr.mxu0 0.0
        %687 = vmatpush1.msra.mxu0 0.0
        %688 = vmatprep.subr.mxu0 0.0
        %689 = vmatpush1.msra.mxu0 0.0
        %690 = vmatprep.subr.mxu0 0.0
        %691 = vmatpush1.msra.mxu0 0.0
        %692 = vmatprep.subr.mxu0 0.0
        %693 = vmatpush1.msra.mxu0 0.0
        %694 = vmatprep.mubr.f32.mxu0 0.0
        %695 = vmatmul.mubr.f32.gmra.mrb[0].mxu0 %v628
        %v696 = vpop.f32.mrb[0].mxu0
        %v697 = vadd.f32 %v625, %v696
        %v698 = vpop.f32.mrb[0].mxu0
        %699 = vdwg.mxu0
        %v700 = vld [vmem:[%s464] sm:$0xff]
        %v701 = vld [vmem:[#allocation11] sm:$0xff]
        %v702 = vld [vmem:[#allocation11 + $0x8] sm:$0xff]
        %v703 = vld [vmem:[#allocation11 + $0x10] sm:$0xff]
        %v704 = vld [vmem:[#allocation11 + $0x18] sm:$0xff]
        %v705 = vld [vmem:[#allocation13] sm:$0x1]
        %v707 = vlaneseq
        %v708 = vshrl.u32 %v707, 7
        %v709 = vsub.s32 0, %v708
        %v710 = vrot.slane %v705, %v709
        %v713 = vsel %vm541, %v700, 0
        %715 = vmatprep.subr.mxu0 0.0
        %716 = vmatpush1.msra.mxu0 %v701
        %717 = vmatprep.subr.mxu0 0.0
        %718 = vmatpush1.msra.mxu0 %v702
        %719 = vmatprep.subr.mxu0 0.0
        %720 = vmatpush1.msra.mxu0 %v703
        %721 = vmatprep.subr.mxu0 0.0
        %722 = vmatpush1.msra.mxu0 %v704
        %723 = vmatprep.subr.mxu0 0.0
        %724 = vmatpush1.msra.mxu0 0.0
        %725 = vmatprep.subr.mxu0 0.0
        %726 = vmatpush1.msra.mxu0 0.0
        %727 = vmatprep.subr.mxu0 0.0
        %728 = vmatpush1.msra.mxu0 0.0
        %729 = vmatprep.subr.mxu0 0.0
        %730 = vmatpush1.msra.mxu0 0.0
        %731 = vmatprep.subr.mxu0 0.0
        %732 = vmatpush1.msra.mxu0 0.0
        %733 = vmatprep.subr.mxu0 0.0
        %734 = vmatpush1.msra.mxu0 0.0
        %735 = vmatprep.subr.mxu0 0.0
        %736 = vmatpush1.msra.mxu0 0.0
        %737 = vmatprep.subr.mxu0 0.0
        %738 = vmatpush1.msra.mxu0 0.0
        %739 = vmatprep.subr.mxu0 0.0
        %740 = vmatpush1.msra.mxu0 0.0
        %741 = vmatprep.subr.mxu0 0.0
        %742 = vmatpush1.msra.mxu0 0.0
        %743 = vmatprep.subr.mxu0 0.0
        %744 = vmatpush1.msra.mxu0 0.0
        %745 = vmatprep.subr.mxu0 0.0
        %746 = vmatpush1.msra.mxu0 0.0
        %747 = vmatprep.subr.mxu0 0.0
        %748 = vmatpush1.msra.mxu0 0.0
        %749 = vmatprep.subr.mxu0 0.0
        %750 = vmatpush1.msra.mxu0 0.0
        %751 = vmatprep.subr.mxu0 0.0
        %752 = vmatpush1.msra.mxu0 0.0
        %753 = vmatprep.subr.mxu0 0.0
        %754 = vmatpush1.msra.mxu0 0.0
        %755 = vmatprep.subr.mxu0 0.0
        %756 = vmatpush1.msra.mxu0 0.0
        %757 = vmatprep.subr.mxu0 0.0
        %758 = vmatpush1.msra.mxu0 0.0
        %759 = vmatprep.subr.mxu0 0.0
        %760 = vmatpush1.msra.mxu0 0.0
        %761 = vmatprep.subr.mxu0 0.0
        %762 = vmatpush1.msra.mxu0 0.0
        %763 = vmatprep.subr.mxu0 0.0
        %764 = vmatpush1.msra.mxu0 0.0
        %765 = vmatprep.subr.mxu0 0.0
        %766 = vmatpush1.msra.mxu0 0.0
        %767 = vmatprep.subr.mxu0 0.0
        %768 = vmatpush1.msra.mxu0 0.0
        %769 = vmatprep.subr.mxu0 0.0
        %770 = vmatpush1.msra.mxu0 0.0
        %771 = vmatprep.subr.mxu0 0.0
        %772 = vmatpush1.msra.mxu0 0.0
        %773 = vmatprep.subr.mxu0 0.0
        %774 = vmatpush1.msra.mxu0 0.0
        %775 = vmatprep.subr.mxu0 0.0
        %776 = vmatpush1.msra.mxu0 0.0
        %777 = vmatprep.subr.mxu0 0.0
        %778 = vmatpush1.msra.mxu0 0.0
        %779 = vmatprep.mubr.f32.mxu0 0.0
        %780 = vmatmul.mubr.f32.gmra.mrb[0].mxu0 %v713
        %v781 = vpop.f32.mrb[0].mxu0
        %v782 = vadd.f32 %v710, %v781
        %v783 = vpop.f32.mrb[0].mxu0
        %784 = vdwg.mxu0
        %v785 = vmul.f32 %v612, 0.35355338
        %v786 = vlaneseq
        %v787 = vshrl.u32 %v786, 7
        %v788 = vlaneseq
        %v789 = vand.u32 %v788, 127
        %vm790 = vcmp.le.s32.totalorder %v789, %v787
        %v791 = vsel %vm790, 0.0, -1e+09
        %793 = vrot.lane.b32.xlu0 %v785, 120
        %v794 = vpop.permute.xlu0 %793
        %796 = vrot.lane.b32.xlu0 %v785, 112
        %v797 = vpop.permute.xlu0 %796
        %799 = vrot.lane.b32.xlu0 %v785, 104
        %v800 = vpop.permute.xlu0 %799
        %v802 = vcombine.low %v785, %v797
        %v803 = vcombine.high %v785, %v797
        %v805 = vunpack.c.l.s4 1983009808
        %v806 = vunpack.c.0.s8 %v805
        %v807 = vlaneseq
        %v808 = vshrl.u32 %v807, 7
        %v809 = vsub.s32 %v806, %v808
        %v810 = vrot.slane %v802, %v809
        %v812 = vunpack.c.l.s4 1983009808
        %v813 = vunpack.c.0.s8 %v812
        %v814 = vlaneseq
        %v815 = vshrl.u32 %v814, 7
        %v816 = vsub.s32 %v813, %v815
        %v817 = vrot.slane %v803, %v816
        %v818 = vcombine.low %v794, %v800
        %v819 = vcombine.high %v794, %v800
        %v821 = vunpack.c.l.s4 1983009808
        %v822 = vunpack.c.0.s8 %v821
        %v823 = vlaneseq
        %v824 = vshrl.u32 %v823, 7
        %v825 = vsub.s32 %v822, %v824
        %v826 = vrot.slane %v818, %v825
        %v828 = vunpack.c.l.s4 1983009808
        %v829 = vunpack.c.0.s8 %v828
        %v830 = vlaneseq
        %v831 = vshrl.u32 %v830, 7
        %v832 = vsub.s32 %v829, %v831
        %v833 = vrot.slane %v819, %v832
        %v834 = vcombine.low %v810, %v826
        %v835 = vcombine.high %v810, %v826
        %v837 = vunpack.c.l.s4 1934713408
        %v838 = vunpack.c.0.s8 %v837
        %v839 = vlaneseq
        %v840 = vshrl.u32 %v839, 7
        %v841 = vsub.s32 %v838, %v840
        %v842 = vrot.slane %v834, %v841
        %v844 = vunpack.c.l.s4 1934713408
        %v845 = vunpack.c.0.s8 %v844
        %v846 = vlaneseq
        %v847 = vshrl.u32 %v846, 7
        %v848 = vsub.s32 %v845, %v847
        %v849 = vrot.slane %v835, %v848
        %v850 = vcombine.low %v817, %v833
        %v851 = vcombine.high %v817, %v833
        %v853 = vunpack.c.l.s4 1934713408
        %v854 = vunpack.c.0.s8 %v853
        %v855 = vlaneseq
        %v856 = vshrl.u32 %v855, 7
        %v857 = vsub.s32 %v854, %v856
        %v858 = vrot.slane %v850, %v857
        %v860 = vunpack.c.l.s4 1934713408
        %v861 = vunpack.c.0.s8 %v860
        %v862 = vlaneseq
        %v863 = vshrl.u32 %v862, 7
        %v864 = vsub.s32 %v861, %v863
        %v865 = vrot.slane %v851, %v864
        %v866 = vcombine.high %v842, 0.0
        %v867 = vcombine.high %v849, 0.0
        %v868 = vcombine.high %v858, 0.0
        %v869 = vcombine.high %v865, 0.0
        %v870 = vcombine.low %v842, %v849
        %v872 = vunpack.c.l.s4 1983009808
        %v873 = vunpack.c.0.s8 %v872
        %v874 = vlaneseq
        %v875 = vshrl.u32 %v874, 7
        %v876 = vsub.s32 %v873, %v875
        %v877 = vrot.slane %v870, %v876
        %v878 = vcombine.low %v866, %v867
        %v880 = vunpack.c.l.s4 1983009808
        %v881 = vunpack.c.0.s8 %v880
        %v882 = vlaneseq
        %v883 = vshrl.u32 %v882, 7
        %v884 = vsub.s32 %v881, %v883
        %v885 = vrot.slane %v878, %v884
        %v886 = vcombine.low %v858, %v865
        %v888 = vunpack.c.l.s4 1983009808
        %v889 = vunpack.c.0.s8 %v888
        %v890 = vlaneseq
        %v891 = vshrl.u32 %v890, 7
        %v892 = vsub.s32 %v889, %v891
        %v893 = vrot.slane %v886, %v892
        %v894 = vcombine.low %v868, %v869
        %v896 = vunpack.c.l.s4 1983009808
        %v897 = vunpack.c.0.s8 %v896
        %v898 = vlaneseq
        %v899 = vshrl.u32 %v898, 7
        %v900 = vsub.s32 %v897, %v899
        %v901 = vrot.slane %v894, %v900
        %v902 = vcombine.low %v877, %v885
        %v903 = vcombine.high %v877, %v885
        %v905 = vunpack.c.l.s4 1934713408
        %v906 = vunpack.c.0.s8 %v905
        %v907 = vlaneseq
        %v908 = vshrl.u32 %v907, 7
        %v909 = vsub.s32 %v906, %v908
        %v910 = vrot.slane %v902, %v909
        %v912 = vunpack.c.l.s4 1934713408
        %v913 = vunpack.c.0.s8 %v912
        %v914 = vlaneseq
        %v915 = vshrl.u32 %v914, 7
        %v916 = vsub.s32 %v913, %v915
        %v917 = vrot.slane %v903, %v916
        %v918 = vcombine.low %v893, %v901
        %v919 = vcombine.high %v893, %v901
        %v921 = vunpack.c.l.s4 1934713408
        %v922 = vunpack.c.0.s8 %v921
        %v923 = vlaneseq
        %v924 = vshrl.u32 %v923, 7
        %v925 = vsub.s32 %v922, %v924
        %v926 = vrot.slane %v918, %v925
        %v928 = vunpack.c.l.s4 1934713408
        %v929 = vunpack.c.0.s8 %v928
        %v930 = vlaneseq
        %v931 = vshrl.u32 %v930, 7
        %v932 = vsub.s32 %v929, %v931
        %v933 = vrot.slane %v919, %v932
        %v934 = vcombine.low %v910, %v926
        %v935 = vcombine.high %v910, %v926
        %v936 = vcombine.low %v917, %v933
        %v937 = vcombine.high %v917, %v933
        %939 = vrot.lane.b32.xlu0 %v697, 120
        %v940 = vpop.permute.xlu0 %939
        %942 = vrot.lane.b32.xlu0 %v697, 112
        %v943 = vpop.permute.xlu0 %942
        %945 = vrot.lane.b32.xlu0 %v697, 104
        %v946 = vpop.permute.xlu0 %945
        %v948 = vcombine.low %v697, %v943
        %v949 = vcombine.high %v697, %v943
        %v951 = vunpack.c.l.s4 1983009808
        %v952 = vunpack.c.0.s8 %v951
        %v953 = vlaneseq
        %v954 = vshrl.u32 %v953, 7
        %v955 = vsub.s32 %v952, %v954
        %v956 = vrot.slane %v948, %v955
        %v958 = vunpack.c.l.s4 1983009808
        %v959 = vunpack.c.0.s8 %v958
        %v960 = vlaneseq
        %v961 = vshrl.u32 %v960, 7
        %v962 = vsub.s32 %v959, %v961
        %v963 = vrot.slane %v949, %v962
        %v964 = vcombine.low %v940, %v946
        %v965 = vcombine.high %v940, %v946
        %v967 = vunpack.c.l.s4 1983009808
        %v968 = vunpack.c.0.s8 %v967
        %v969 = vlaneseq
        %v970 = vshrl.u32 %v969, 7
        %v971 = vsub.s32 %v968, %v970
        %v972 = vrot.slane %v964, %v971
        %v974 = vunpack.c.l.s4 1983009808
        %v975 = vunpack.c.0.s8 %v974
        %v976 = vlaneseq
        %v977 = vshrl.u32 %v976, 7
        %v978 = vsub.s32 %v975, %v977
        %v979 = vrot.slane %v965, %v978
        %v980 = vcombine.low %v956, %v972
        %v981 = vcombine.high %v956, %v972
        %v983 = vunpack.c.l.s4 1934713408
        %v984 = vunpack.c.0.s8 %v983
        %v985 = vlaneseq
        %v986 = vshrl.u32 %v985, 7
        %v987 = vsub.s32 %v984, %v986
        %v988 = vrot.slane %v980, %v987
        %v990 = vunpack.c.l.s4 1934713408
        %v991 = vunpack.c.0.s8 %v990
        %v992 = vlaneseq
        %v993 = vshrl.u32 %v992, 7
        %v994 = vsub.s32 %v991, %v993
        %v995 = vrot.slane %v981, %v994
        %v996 = vcombine.low %v963, %v979
        %v997 = vcombine.high %v963, %v979
        %v999 = vunpack.c.l.s4 1934713408
        %v1000 = vunpack.c.0.s8 %v999
        %v1001 = vlaneseq
        %v1002 = vshrl.u32 %v1001, 7
        %v1003 = vsub.s32 %v1000, %v1002
        %v1004 = vrot.slane %v996, %v1003
        %v1006 = vunpack.c.l.s4 1934713408
        %v1007 = vunpack.c.0.s8 %v1006
        %v1008 = vlaneseq
        %v1009 = vshrl.u32 %v1008, 7
        %v1010 = vsub.s32 %v1007, %v1009
        %v1011 = vrot.slane %v997, %v1010
        %v1012 = vcombine.high %v988, 0.0
        %v1013 = vcombine.high %v995, 0.0
        %v1014 = vcombine.high %v1004, 0.0
        %v1015 = vcombine.high %v1011, 0.0
        %v1016 = vcombine.low %v988, %v995
        %v1018 = vunpack.c.l.s4 1983009808
        %v1019 = vunpack.c.0.s8 %v1018
        %v1020 = vlaneseq
        %v1021 = vshrl.u32 %v1020, 7
        %v1022 = vsub.s32 %v1019, %v1021
        %v1023 = vrot.slane %v1016, %v1022
        %v1024 = vcombine.low %v1012, %v1013
        %v1026 = vunpack.c.l.s4 1983009808
        %v1027 = vunpack.c.0.s8 %v1026
        %v1028 = vlaneseq
        %v1029 = vshrl.u32 %v1028, 7
        %v1030 = vsub.s32 %v1027, %v1029
        %v1031 = vrot.slane %v1024, %v1030
        %v1032 = vcombine.low %v1004, %v1011
        %v1034 = vunpack.c.l.s4 1983009808
        %v1035 = vunpack.c.0.s8 %v1034
        %v1036 = vlaneseq
        %v1037 = vshrl.u32 %v1036, 7
        %v1038 = vsub.s32 %v1035, %v1037
        %v1039 = vrot.slane %v1032, %v1038
        %v1040 = vcombine.low %v1014, %v1015
        %v1042 = vunpack.c.l.s4 1983009808
        %v1043 = vunpack.c.0.s8 %v1042
        %v1044 = vlaneseq
        %v1045 = vshrl.u32 %v1044, 7
        %v1046 = vsub.s32 %v1043, %v1045
        %v1047 = vrot.slane %v1040, %v1046
        %v1048 = vcombine.low %v1023, %v1031
        %v1049 = vcombine.high %v1023, %v1031
        %v1051 = vunpack.c.l.s4 1934713408
        %v1052 = vunpack.c.0.s8 %v1051
        %v1053 = vlaneseq
        %v1054 = vshrl.u32 %v1053, 7
        %v1055 = vsub.s32 %v1052, %v1054
        %v1056 = vrot.slane %v1048, %v1055
        %v1058 = vunpack.c.l.s4 1934713408
        %v1059 = vunpack.c.0.s8 %v1058
        %v1060 = vlaneseq
        %v1061 = vshrl.u32 %v1060, 7
        %v1062 = vsub.s32 %v1059, %v1061
        %v1063 = vrot.slane %v1049, %v1062
        %v1064 = vcombine.low %v1039, %v1047
        %v1065 = vcombine.high %v1039, %v1047
        %v1067 = vunpack.c.l.s4 1934713408
        %v1068 = vunpack.c.0.s8 %v1067
        %v1069 = vlaneseq
        %v1070 = vshrl.u32 %v1069, 7
        %v1071 = vsub.s32 %v1068, %v1070
        %v1072 = vrot.slane %v1064, %v1071
        %v1074 = vunpack.c.l.s4 1934713408
        %v1075 = vunpack.c.0.s8 %v1074
        %v1076 = vlaneseq
        %v1077 = vshrl.u32 %v1076, 7
        %v1078 = vsub.s32 %v1075, %v1077
        %v1079 = vrot.slane %v1065, %v1078
        %v1080 = vcombine.low %v1056, %v1072
        %v1081 = vcombine.high %v1056, %v1072
        %v1082 = vcombine.low %v1063, %v1079
        %v1083 = vcombine.high %v1063, %v1079
        %1085 = vrot.lane.b32.xlu0 %v782, 120
        %v1086 = vpop.permute.xlu0 %1085
        %1088 = vrot.lane.b32.xlu0 %v782, 112
        %v1089 = vpop.permute.xlu0 %1088
        %1091 = vrot.lane.b32.xlu0 %v782, 104
        %v1092 = vpop.permute.xlu0 %1091
        %v1094 = vcombine.low %v782, %v1089
        %v1095 = vcombine.high %v782, %v1089
        %v1097 = vunpack.c.l.s4 1983009808
        %v1098 = vunpack.c.0.s8 %v1097
        %v1099 = vlaneseq
        %v1100 = vshrl.u32 %v1099, 7
        %v1101 = vsub.s32 %v1098, %v1100
        %v1102 = vrot.slane %v1094, %v1101
        %v1104 = vunpack.c.l.s4 1983009808
        %v1105 = vunpack.c.0.s8 %v1104
        %v1106 = vlaneseq
        %v1107 = vshrl.u32 %v1106, 7
        %v1108 = vsub.s32 %v1105, %v1107
        %v1109 = vrot.slane %v1095, %v1108
        %v1110 = vcombine.low %v1086, %v1092
        %v1111 = vcombine.high %v1086, %v1092
        %v1113 = vunpack.c.l.s4 1983009808
        %v1114 = vunpack.c.0.s8 %v1113
        %v1115 = vlaneseq
        %v1116 = vshrl.u32 %v1115, 7
        %v1117 = vsub.s32 %v1114, %v1116
        %v1118 = vrot.slane %v1110, %v1117
        %v1120 = vunpack.c.l.s4 1983009808
        %v1121 = vunpack.c.0.s8 %v1120
        %v1122 = vlaneseq
        %v1123 = vshrl.u32 %v1122, 7
        %v1124 = vsub.s32 %v1121, %v1123
        %v1125 = vrot.slane %v1111, %v1124
        %v1126 = vcombine.low %v1102, %v1118
        %v1127 = vcombine.high %v1102, %v1118
        %v1129 = vunpack.c.l.s4 1934713408
        %v1130 = vunpack.c.0.s8 %v1129
        %v1131 = vlaneseq
        %v1132 = vshrl.u32 %v1131, 7
        %v1133 = vsub.s32 %v1130, %v1132
        %v1134 = vrot.slane %v1126, %v1133
        %v1136 = vunpack.c.l.s4 1934713408
        %v1137 = vunpack.c.0.s8 %v1136
        %v1138 = vlaneseq
        %v1139 = vshrl.u32 %v1138, 7
        %v1140 = vsub.s32 %v1137, %v1139
        %v1141 = vrot.slane %v1127, %v1140
        %v1142 = vcombine.low %v1109, %v1125
        %v1143 = vcombine.high %v1109, %v1125
        %v1145 = vunpack.c.l.s4 1934713408
        %v1146 = vunpack.c.0.s8 %v1145
        %v1147 = vlaneseq
        %v1148 = vshrl.u32 %v1147, 7
        %v1149 = vsub.s32 %v1146, %v1148
        %v1150 = vrot.slane %v1142, %v1149
        %v1152 = vunpack.c.l.s4 1934713408
        %v1153 = vunpack.c.0.s8 %v1152
        %v1154 = vlaneseq
        %v1155 = vshrl.u32 %v1154, 7
        %v1156 = vsub.s32 %v1153, %v1155
        %v1157 = vrot.slane %v1143, %v1156
        %v1158 = vcombine.high %v1134, 0.0
        %v1159 = vcombine.high %v1141, 0.0
        %v1160 = vcombine.high %v1150, 0.0
        %v1161 = vcombine.high %v1157, 0.0
        %v1162 = vcombine.low %v1134, %v1141
        %v1164 = vunpack.c.l.s4 1983009808
        %v1165 = vunpack.c.0.s8 %v1164
        %v1166 = vlaneseq
        %v1167 = vshrl.u32 %v1166, 7
        %v1168 = vsub.s32 %v1165, %v1167
        %v1169 = vrot.slane %v1162, %v1168
        %v1170 = vcombine.low %v1158, %v1159
        %v1172 = vunpack.c.l.s4 1983009808
        %v1173 = vunpack.c.0.s8 %v1172
        %v1174 = vlaneseq
        %v1175 = vshrl.u32 %v1174, 7
        %v1176 = vsub.s32 %v1173, %v1175
        %v1177 = vrot.slane %v1170, %v1176
        %v1178 = vcombine.low %v1150, %v1157
        %v1180 = vunpack.c.l.s4 1983009808
        %v1181 = vunpack.c.0.s8 %v1180
        %v1182 = vlaneseq
        %v1183 = vshrl.u32 %v1182, 7
        %v1184 = vsub.s32 %v1181, %v1183
        %v1185 = vrot.slane %v1178, %v1184
        %v1186 = vcombine.low %v1160, %v1161
        %v1188 = vunpack.c.l.s4 1983009808
        %v1189 = vunpack.c.0.s8 %v1188
        %v1190 = vlaneseq
        %v1191 = vshrl.u32 %v1190, 7
        %v1192 = vsub.s32 %v1189, %v1191
        %v1193 = vrot.slane %v1186, %v1192
        %v1194 = vcombine.low %v1169, %v1177
        %v1195 = vcombine.high %v1169, %v1177
        %v1197 = vunpack.c.l.s4 1934713408
        %v1198 = vunpack.c.0.s8 %v1197
        %v1199 = vlaneseq
        %v1200 = vshrl.u32 %v1199, 7
        %v1201 = vsub.s32 %v1198, %v1200
        %v1202 = vrot.slane %v1194, %v1201
        %v1204 = vunpack.c.l.s4 1934713408
        %v1205 = vunpack.c.0.s8 %v1204
        %v1206 = vlaneseq
        %v1207 = vshrl.u32 %v1206, 7
        %v1208 = vsub.s32 %v1205, %v1207
        %v1209 = vrot.slane %v1195, %v1208
        %v1210 = vcombine.low %v1185, %v1193
        %v1211 = vcombine.high %v1185, %v1193
        %v1213 = vunpack.c.l.s4 1934713408
        %v1214 = vunpack.c.0.s8 %v1213
        %v1215 = vlaneseq
        %v1216 = vshrl.u32 %v1215, 7
        %v1217 = vsub.s32 %v1214, %v1216
        %v1218 = vrot.slane %v1210, %v1217
        %v1220 = vunpack.c.l.s4 1934713408
        %v1221 = vunpack.c.0.s8 %v1220
        %v1222 = vlaneseq
        %v1223 = vshrl.u32 %v1222, 7
        %v1224 = vsub.s32 %v1221, %v1223
        %v1225 = vrot.slane %v1211, %v1224
        %v1226 = vcombine.low %v1202, %v1218
        %v1227 = vcombine.high %v1202, %v1218
        %v1228 = vcombine.low %v1209, %v1225
        %v1229 = vcombine.high %v1209, %v1225
        %vm1230 = vcmask 64512
        %v1232 = vsel %vm1230, %v934, 0
        %v1235 = vsel %vm1230, %v1080, 0
        %1237 = vmatprep.subr.mxu0 0.0
        %1238 = vmatpush1.xpose.msra.mxu0 %v1235
        %1239 = vmatprep.subr.mxu0 0.0
        %1240 = vmatpush1.xpose.msra.mxu0 0.0
        %1241 = vmatprep.subr.mxu0 0.0
        %1242 = vmatpush1.xpose.msra.mxu0 0.0
        %1243 = vmatprep.subr.mxu0 0.0
        %1244 = vmatpush1.xpose.msra.mxu0 0.0
        %1245 = vmatprep.subr.mxu0 0.0
        %1246 = vmatpush1.xpose.msra.mxu0 0.0
        %1247 = vmatprep.subr.mxu0 0.0
        %1248 = vmatpush1.xpose.msra.mxu0 0.0
        %1249 = vmatprep.subr.mxu0 0.0
        %1250 = vmatpush1.xpose.msra.mxu0 0.0
        %1251 = vmatprep.subr.mxu0 0.0
        %1252 = vmatpush1.xpose.msra.mxu0 0.0
        %1253 = vmatprep.subr.mxu0 0.0
        %1254 = vmatpush1.xpose.msra.mxu0 0.0
        %1255 = vmatprep.subr.mxu0 0.0
        %1256 = vmatpush1.xpose.msra.mxu0 0.0
        %1257 = vmatprep.subr.mxu0 0.0
        %1258 = vmatpush1.xpose.msra.mxu0 0.0
        %1259 = vmatprep.subr.mxu0 0.0
        %1260 = vmatpush1.xpose.msra.mxu0 0.0
        %1261 = vmatprep.subr.mxu0 0.0
        %1262 = vmatpush1.xpose.msra.mxu0 0.0
        %1263 = vmatprep.subr.mxu0 0.0
        %1264 = vmatpush1.xpose.msra.mxu0 0.0
        %1265 = vmatprep.subr.mxu0 0.0
        %1266 = vmatpush1.xpose.msra.mxu0 0.0
        %1267 = vmatprep.subr.mxu0 0.0
        %1268 = vmatpush1.xpose.msra.mxu0 0.0
        %1269 = vmatprep.subr.mxu0 0.0
        %1270 = vmatpush1.xpose.msra.mxu0 0.0
        %1271 = vmatprep.subr.mxu0 0.0
        %1272 = vmatpush1.xpose.msra.mxu0 0.0
        %1273 = vmatprep.subr.mxu0 0.0
        %1274 = vmatpush1.xpose.msra.mxu0 0.0
        %1275 = vmatprep.subr.mxu0 0.0
        %1276 = vmatpush1.xpose.msra.mxu0 0.0
        %1277 = vmatprep.subr.mxu0 0.0
        %1278 = vmatpush1.xpose.msra.mxu0 0.0
        %1279 = vmatprep.subr.mxu0 0.0
        %1280 = vmatpush1.xpose.msra.mxu0 0.0
        %1281 = vmatprep.subr.mxu0 0.0
        %1282 = vmatpush1.xpose.msra.mxu0 0.0
        %1283 = vmatprep.subr.mxu0 0.0
        %1284 = vmatpush1.xpose.msra.mxu0 0.0
        %1285 = vmatprep.subr.mxu0 0.0
        %1286 = vmatpush1.xpose.msra.mxu0 0.0
        %1287 = vmatprep.subr.mxu0 0.0
        %1288 = vmatpush1.xpose.msra.mxu0 0.0
        %1289 = vmatprep.subr.mxu0 0.0
        %1290 = vmatpush1.xpose.msra.mxu0 0.0
        %1291 = vmatprep.subr.mxu0 0.0
        %1292 = vmatpush1.xpose.msra.mxu0 0.0
        %1293 = vmatprep.subr.mxu0 0.0
        %1294 = vmatpush1.xpose.msra.mxu0 0.0
        %1295 = vmatprep.subr.mxu0 0.0
        %1296 = vmatpush1.xpose.msra.mxu0 0.0
        %1297 = vmatprep.subr.mxu0 0.0
        %1298 = vmatpush1.xpose.msra.mxu0 0.0
        %1299 = vmatprep.subr.mxu0 0.0
        %1300 = vmatpush1.xpose.msra.mxu0 0.0
        %1301 = vmatprep.mubr.f32.mxu0 0.0
        %1302 = vmatmul.mubr.f32.gmra.mrb[0].mxu0 %v1232
        %v1303 = vpop.f32.mrb[0].mxu0
        %v1304 = vadd.f32 %v791, %v1303
        %v1305 = vpop.f32.mrb[0].mxu0
        %1306 = vdwg.mxu0
        %v1308 = vsel %vm1230, %v935, 0
        %v1311 = vsel %vm1230, %v1081, 0
        %1313 = vmatprep.subr.mxu0 0.0
        %1314 = vmatpush1.xpose.msra.mxu0 %v1311
        %1315 = vmatprep.subr.mxu0 0.0
        %1316 = vmatpush1.xpose.msra.mxu0 0.0
        %1317 = vmatprep.subr.mxu0 0.0
        %1318 = vmatpush1.xpose.msra.mxu0 0.0
        %1319 = vmatprep.subr.mxu0 0.0
        %1320 = vmatpush1.xpose.msra.mxu0 0.0
        %1321 = vmatprep.subr.mxu0 0.0
        %1322 = vmatpush1.xpose.msra.mxu0 0.0
        %1323 = vmatprep.subr.mxu0 0.0
        %1324 = vmatpush1.xpose.msra.mxu0 0.0
        %1325 = vmatprep.subr.mxu0 0.0
        %1326 = vmatpush1.xpose.msra.mxu0 0.0
        %1327 = vmatprep.subr.mxu0 0.0
        %1328 = vmatpush1.xpose.msra.mxu0 0.0
        %1329 = vmatprep.subr.mxu0 0.0
        %1330 = vmatpush1.xpose.msra.mxu0 0.0
        %1331 = vmatprep.subr.mxu0 0.0
        %1332 = vmatpush1.xpose.msra.mxu0 0.0
        %1333 = vmatprep.subr.mxu0 0.0
        %1334 = vmatpush1.xpose.msra.mxu0 0.0
        %1335 = vmatprep.subr.mxu0 0.0
        %1336 = vmatpush1.xpose.msra.mxu0 0.0
        %1337 = vmatprep.subr.mxu0 0.0
        %1338 = vmatpush1.xpose.msra.mxu0 0.0
        %1339 = vmatprep.subr.mxu0 0.0
        %1340 = vmatpush1.xpose.msra.mxu0 0.0
        %1341 = vmatprep.subr.mxu0 0.0
        %1342 = vmatpush1.xpose.msra.mxu0 0.0
        %1343 = vmatprep.subr.mxu0 0.0
        %1344 = vmatpush1.xpose.msra.mxu0 0.0
        %1345 = vmatprep.subr.mxu0 0.0
        %1346 = vmatpush1.xpose.msra.mxu0 0.0
        %1347 = vmatprep.subr.mxu0 0.0
        %1348 = vmatpush1.xpose.msra.mxu0 0.0
        %1349 = vmatprep.subr.mxu0 0.0
        %1350 = vmatpush1.xpose.msra.mxu0 0.0
        %1351 = vmatprep.subr.mxu0 0.0
        %1352 = vmatpush1.xpose.msra.mxu0 0.0
        %1353 = vmatprep.subr.mxu0 0.0
        %1354 = vmatpush1.xpose.msra.mxu0 0.0
        %1355 = vmatprep.subr.mxu0 0.0
        %1356 = vmatpush1.xpose.msra.mxu0 0.0
        %1357 = vmatprep.subr.mxu0 0.0
        %1358 = vmatpush1.xpose.msra.mxu0 0.0
        %1359 = vmatprep.subr.mxu0 0.0
        %1360 = vmatpush1.xpose.msra.mxu0 0.0
        %1361 = vmatprep.subr.mxu0 0.0
        %1362 = vmatpush1.xpose.msra.mxu0 0.0
        %1363 = vmatprep.subr.mxu0 0.0
        %1364 = vmatpush1.xpose.msra.mxu0 0.0
        %1365 = vmatprep.subr.mxu0 0.0
        %1366 = vmatpush1.xpose.msra.mxu0 0.0
        %1367 = vmatprep.subr.mxu0 0.0
        %1368 = vmatpush1.xpose.msra.mxu0 0.0
        %1369 = vmatprep.subr.mxu0 0.0
        %1370 = vmatpush1.xpose.msra.mxu0 0.0
        %1371 = vmatprep.subr.mxu0 0.0
        %1372 = vmatpush1.xpose.msra.mxu0 0.0
        %1373 = vmatprep.subr.mxu0 0.0
        %1374 = vmatpush1.xpose.msra.mxu0 0.0
        %1375 = vmatprep.subr.mxu0 0.0
        %1376 = vmatpush1.xpose.msra.mxu0 0.0
        %1377 = vmatprep.mubr.f32.mxu0 0.0
        %1378 = vmatmul.mubr.f32.gmra.mrb[0].mxu0 %v1308
        %v1379 = vpop.f32.mrb[0].mxu0
        %v1380 = vadd.f32 %v791, %v1379
        %v1381 = vpop.f32.mrb[0].mxu0
        %1382 = vdwg.mxu0
        %v1384 = vsel %vm1230, %v936, 0
        %v1387 = vsel %vm1230, %v1082, 0
        %1389 = vmatprep.subr.mxu0 0.0
        %1390 = vmatpush1.xpose.msra.mxu0 %v1387
        %1391 = vmatprep.subr.mxu0 0.0
        %1392 = vmatpush1.xpose.msra.mxu0 0.0
        %1393 = vmatprep.subr.mxu0 0.0
        %1394 = vmatpush1.xpose.msra.mxu0 0.0
        %1395 = vmatprep.subr.mxu0 0.0
        %1396 = vmatpush1.xpose.msra.mxu0 0.0
        %1397 = vmatprep.subr.mxu0 0.0
        %1398 = vmatpush1.xpose.msra.mxu0 0.0
        %1399 = vmatprep.subr.mxu0 0.0
        %1400 = vmatpush1.xpose.msra.mxu0 0.0
        %1401 = vmatprep.subr.mxu0 0.0
        %1402 = vmatpush1.xpose.msra.mxu0 0.0
        %1403 = vmatprep.subr.mxu0 0.0
        %1404 = vmatpush1.xpose.msra.mxu0 0.0
        %1405 = vmatprep.subr.mxu0 0.0
        %1406 = vmatpush1.xpose.msra.mxu0 0.0
        %1407 = vmatprep.subr.mxu0 0.0
        %1408 = vmatpush1.xpose.msra.mxu0 0.0
        %1409 = vmatprep.subr.mxu0 0.0
        %1410 = vmatpush1.xpose.msra.mxu0 0.0
        %1411 = vmatprep.subr.mxu0 0.0
        %1412 = vmatpush1.xpose.msra.mxu0 0.0
        %1413 = vmatprep.subr.mxu0 0.0
        %1414 = vmatpush1.xpose.msra.mxu0 0.0
        %1415 = vmatprep.subr.mxu0 0.0
        %1416 = vmatpush1.xpose.msra.mxu0 0.0
        %1417 = vmatprep.subr.mxu0 0.0
        %1418 = vmatpush1.xpose.msra.mxu0 0.0
        %1419 = vmatprep.subr.mxu0 0.0
        %1420 = vmatpush1.xpose.msra.mxu0 0.0
        %1421 = vmatprep.subr.mxu0 0.0
        %1422 = vmatpush1.xpose.msra.mxu0 0.0
        %1423 = vmatprep.subr.mxu0 0.0
        %1424 = vmatpush1.xpose.msra.mxu0 0.0
        %1425 = vmatprep.subr.mxu0 0.0
        %1426 = vmatpush1.xpose.msra.mxu0 0.0
        %1427 = vmatprep.subr.mxu0 0.0
        %1428 = vmatpush1.xpose.msra.mxu0 0.0
        %1429 = vmatprep.subr.mxu0 0.0
        %1430 = vmatpush1.xpose.msra.mxu0 0.0
        %1431 = vmatprep.subr.mxu0 0.0
        %1432 = vmatpush1.xpose.msra.mxu0 0.0
        %1433 = vmatprep.subr.mxu0 0.0
        %1434 = vmatpush1.xpose.msra.mxu0 0.0
        %1435 = vmatprep.subr.mxu0 0.0
        %1436 = vmatpush1.xpose.msra.mxu0 0.0
        %1437 = vmatprep.subr.mxu0 0.0
        %1438 = vmatpush1.xpose.msra.mxu0 0.0
        %1439 = vmatprep.subr.mxu0 0.0
        %1440 = vmatpush1.xpose.msra.mxu0 0.0
        %1441 = vmatprep.subr.mxu0 0.0
        %1442 = vmatpush1.xpose.msra.mxu0 0.0
        %1443 = vmatprep.subr.mxu0 0.0
        %1444 = vmatpush1.xpose.msra.mxu0 0.0
        %1445 = vmatprep.subr.mxu0 0.0
        %1446 = vmatpush1.xpose.msra.mxu0 0.0
        %1447 = vmatprep.subr.mxu0 0.0
        %1448 = vmatpush1.xpose.msra.mxu0 0.0
        %1449 = vmatprep.subr.mxu0 0.0
        %1450 = vmatpush1.xpose.msra.mxu0 0.0
        %1451 = vmatprep.subr.mxu0 0.0
        %1452 = vmatpush1.xpose.msra.mxu0 0.0
        %1453 = vmatprep.mubr.f32.mxu0 0.0
        %1454 = vmatmul.mubr.f32.gmra.mrb[0].mxu0 %v1384
        %v1455 = vpop.f32.mrb[0].mxu0
        %v1456 = vadd.f32 %v791, %v1455
        %v1457 = vpop.f32.mrb[0].mxu0
        %1458 = vdwg.mxu0
        %v1460 = vsel %vm1230, %v937, 0
        %v1463 = vsel %vm1230, %v1083, 0
        %1465 = vmatprep.subr.mxu0 0.0
        %1466 = vmatpush1.xpose.msra.mxu0 %v1463
        %1467 = vmatprep.subr.mxu0 0.0
        %1468 = vmatpush1.xpose.msra.mxu0 0.0
        %1469 = vmatprep.subr.mxu0 0.0
        %1470 = vmatpush1.xpose.msra.mxu0 0.0
        %1471 = vmatprep.subr.mxu0 0.0
        %1472 = vmatpush1.xpose.msra.mxu0 0.0
        %1473 = vmatprep.subr.mxu0 0.0
        %1474 = vmatpush1.xpose.msra.mxu0 0.0
        %1475 = vmatprep.subr.mxu0 0.0
        %1476 = vmatpush1.xpose.msra.mxu0 0.0
        %1477 = vmatprep.subr.mxu0 0.0
        %1478 = vmatpush1.xpose.msra.mxu0 0.0
        %1479 = vmatprep.subr.mxu0 0.0
        %1480 = vmatpush1.xpose.msra.mxu0 0.0
        %1481 = vmatprep.subr.mxu0 0.0
        %1482 = vmatpush1.xpose.msra.mxu0 0.0
        %1483 = vmatprep.subr.mxu0 0.0
        %1484 = vmatpush1.xpose.msra.mxu0 0.0
        %1485 = vmatprep.subr.mxu0 0.0
        %1486 = vmatpush1.xpose.msra.mxu0 0.0
        %1487 = vmatprep.subr.mxu0 0.0
        %1488 = vmatpush1.xpose.msra.mxu0 0.0
        %1489 = vmatprep.subr.mxu0 0.0
        %1490 = vmatpush1.xpose.msra.mxu0 0.0
        %1491 = vmatprep.subr.mxu0 0.0
        %1492 = vmatpush1.xpose.msra.mxu0 0.0
        %1493 = vmatprep.subr.mxu0 0.0
        %1494 = vmatpush1.xpose.msra.mxu0 0.0
        %1495 = vmatprep.subr.mxu0 0.0
        %1496 = vmatpush1.xpose.msra.mxu0 0.0
        %1497 = vmatprep.subr.mxu0 0.0
        %1498 = vmatpush1.xpose.msra.mxu0 0.0
        %1499 = vmatprep.subr.mxu0 0.0
        %1500 = vmatpush1.xpose.msra.mxu0 0.0
        %1501 = vmatprep.subr.mxu0 0.0
        %1502 = vmatpush1.xpose.msra.mxu0 0.0
        %1503 = vmatprep.subr.mxu0 0.0
        %1504 = vmatpush1.xpose.msra.mxu0 0.0
        %1505 = vmatprep.subr.mxu0 0.0
        %1506 = vmatpush1.xpose.msra.mxu0 0.0
        %1507 = vmatprep.subr.mxu0 0.0
        %1508 = vmatpush1.xpose.msra.mxu0 0.0
        %1509 = vmatprep.subr.mxu0 0.0
        %1510 = vmatpush1.xpose.msra.mxu0 0.0
        %1511 = vmatprep.subr.mxu0 0.0
        %1512 = vmatpush1.xpose.msra.mxu0 0.0
        %1513 = vmatprep.subr.mxu0 0.0
        %1514 = vmatpush1.xpose.msra.mxu0 0.0
        %1515 = vmatprep.subr.mxu0 0.0
        %1516 = vmatpush1.xpose.msra.mxu0 0.0
        %1517 = vmatprep.subr.mxu0 0.0
        %1518 = vmatpush1.xpose.msra.mxu0 0.0
        %1519 = vmatprep.subr.mxu0 0.0
        %1520 = vmatpush1.xpose.msra.mxu0 0.0
        %1521 = vmatprep.subr.mxu0 0.0
        %1522 = vmatpush1.xpose.msra.mxu0 0.0
        %1523 = vmatprep.subr.mxu0 0.0
        %1524 = vmatpush1.xpose.msra.mxu0 0.0
        %1525 = vmatprep.subr.mxu0 0.0
        %1526 = vmatpush1.xpose.msra.mxu0 0.0
        %1527 = vmatprep.subr.mxu0 0.0
        %1528 = vmatpush1.xpose.msra.mxu0 0.0
        %1529 = vmatprep.mubr.f32.mxu0 0.0
        %1530 = vmatmul.mubr.f32.gmra.mrb[0].mxu0 %v1460
        %v1531 = vpop.f32.mrb[0].mxu0
        %v1532 = vadd.f32 %v791, %v1531
        %v1533 = vpop.f32.mrb[0].mxu0
        %1534 = vdwg.mxu0
        %v1535 = vadd.f32 %v1304, 1e-10
        %v1536 = vadd.f32 %v1380, 1e-10
        %v1537 = vadd.f32 %v1456, 1e-10
        %v1538 = vadd.f32 %v1532, 1e-10
        %v1539 = vsel %vm1230, %v1535, -inf
        %1540 = vmax.xlane.f32.xlu0 %v1539
        %v1541 = vpop.xlane.xlu0 %1540
        %v1542 = vsel %vm1230, %v1536, -inf
        %1543 = vmax.xlane.f32.xlu0 %v1542
        %v1544 = vpop.xlane.xlu0 %1543
        %v1545 = vsel %vm1230, %v1537, -inf
        %1546 = vmax.xlane.f32.xlu0 %v1545
        %v1547 = vpop.xlane.xlu0 %1546
        %v1548 = vsel %vm1230, %v1538, -inf
        %1549 = vmax.xlane.f32.xlu0 %v1548
        %v1550 = vpop.xlane.xlu0 %1549
        %v1551 = vsub.f32 %v1535, %v1541
        %v1552 = vsub.f32 %v1536, %v1544
        %v1553 = vsub.f32 %v1537, %v1547
        %v1554 = vsub.f32 %v1538, %v1550
        %v1555 = vmul.f32 %v1551, 1.442695
        %v1556 = vpow.pop %v1555
        %v1557 = vmul.f32 %v1552, 1.442695
        %v1558 = vpow.pop %v1557
        %v1559 = vmul.f32 %v1553, 1.442695
        %v1560 = vpow.pop %v1559
        %v1561 = vmul.f32 %v1554, 1.442695
        %v1562 = vpow.pop %v1561
        %v1563 = vsel %vm1230, %v1556, 0.0
        %1564 = vadd.xlane.f32.xlu0 %v1563
        %v1565 = vpop.xlane.xlu0 %1564
        %v1566 = vsel %vm1230, %v1558, 0.0
        %1567 = vadd.xlane.f32.xlu0 %v1566
        %v1568 = vpop.xlane.xlu0 %1567
        %v1569 = vsel %vm1230, %v1560, 0.0
        %1570 = vadd.xlane.f32.xlu0 %v1569
        %v1571 = vpop.xlane.xlu0 %1570
        %v1572 = vsel %vm1230, %v1562, 0.0
        %1573 = vadd.xlane.f32.xlu0 %v1572
        %v1574 = vpop.xlane.xlu0 %1573
        %v1575 = vrcp.pop %v1565
        %v1576 = vrcp.pop %v1568
        %v1577 = vrcp.pop %v1571
        %v1578 = vrcp.pop %v1574
        %v1579 = vmul.f32 %v1556, %v1575
        %v1580 = vmul.f32 %v1558, %v1576
        %v1581 = vmul.f32 %v1560, %v1577
        %v1582 = vmul.f32 %v1562, %v1578
        %v1584 = vsel %vm1230, %v1579, 0
        %1586 = vmatprep.subr.mxu0 0.0
        %1587 = vmatpush1.msra.mxu0 %v1226
        %1588 = vmatprep.subr.mxu0 0.0
        %1589 = vmatpush1.msra.mxu0 0.0
        %1590 = vmatprep.subr.mxu0 0.0
        %1591 = vmatpush1.msra.mxu0 0.0
        %1592 = vmatprep.subr.mxu0 0.0
        %1593 = vmatpush1.msra.mxu0 0.0
        %1594 = vmatprep.subr.mxu0 0.0
        %1595 = vmatpush1.msra.mxu0 0.0
        %1596 = vmatprep.subr.mxu0 0.0
        %1597 = vmatpush1.msra.mxu0 0.0
        %1598 = vmatprep.subr.mxu0 0.0
        %1599 = vmatpush1.msra.mxu0 0.0
        %1600 = vmatprep.subr.mxu0 0.0
        %1601 = vmatpush1.msra.mxu0 0.0
        %1602 = vmatprep.subr.mxu0 0.0
        %1603 = vmatpush1.msra.mxu0 0.0
        %1604 = vmatprep.subr.mxu0 0.0
        %1605 = vmatpush1.msra.mxu0 0.0
        %1606 = vmatprep.subr.mxu0 0.0
        %1607 = vmatpush1.msra.mxu0 0.0
        %1608 = vmatprep.subr.mxu0 0.0
        %1609 = vmatpush1.msra.mxu0 0.0
        %1610 = vmatprep.subr.mxu0 0.0
        %1611 = vmatpush1.msra.mxu0 0.0
        %1612 = vmatprep.subr.mxu0 0.0
        %1613 = vmatpush1.msra.mxu0 0.0
        %1614 = vmatprep.subr.mxu0 0.0
        %1615 = vmatpush1.msra.mxu0 0.0
        %1616 = vmatprep.subr.mxu0 0.0
        %1617 = vmatpush1.msra.mxu0 0.0
        %1618 = vmatprep.subr.mxu0 0.0
        %1619 = vmatpush1.msra.mxu0 0.0
        %1620 = vmatprep.subr.mxu0 0.0
        %1621 = vmatpush1.msra.mxu0 0.0
        %1622 = vmatprep.subr.mxu0 0.0
        %1623 = vmatpush1.msra.mxu0 0.0
        %1624 = vmatprep.subr.mxu0 0.0
        %1625 = vmatpush1.msra.mxu0 0.0
        %1626 = vmatprep.subr.mxu0 0.0
        %1627 = vmatpush1.msra.mxu0 0.0
        %1628 = vmatprep.subr.mxu0 0.0
        %1629 = vmatpush1.msra.mxu0 0.0
        %1630 = vmatprep.subr.mxu0 0.0
        %1631 = vmatpush1.msra.mxu0 0.0
        %1632 = vmatprep.subr.mxu0 0.0
        %1633 = vmatpush1.msra.mxu0 0.0
        %1634 = vmatprep.subr.mxu0 0.0
        %1635 = vmatpush1.msra.mxu0 0.0
        %1636 = vmatprep.subr.mxu0 0.0
        %1637 = vmatpush1.msra.mxu0 0.0
        %1638 = vmatprep.subr.mxu0 0.0
        %1639 = vmatpush1.msra.mxu0 0.0
        %1640 = vmatprep.subr.mxu0 0.0
        %1641 = vmatpush1.msra.mxu0 0.0
        %1642 = vmatprep.subr.mxu0 0.0
        %1643 = vmatpush1.msra.mxu0 0.0
        %1644 = vmatprep.subr.mxu0 0.0
        %1645 = vmatpush1.msra.mxu0 0.0
        %1646 = vmatprep.subr.mxu0 0.0
        %1647 = vmatpush1.msra.mxu0 0.0
        %1648 = vmatprep.subr.mxu0 0.0
        %1649 = vmatpush1.msra.mxu0 0.0
        %1650 = vmatprep.mubr.f32.mxu0 0.0
        %1651 = vmatmul.mubr.f32.gmra.mrb[0].mxu0 %v1584
        %v1652 = vpop.f32.mrb[0].mxu0
        %v1653 = vadd.f32 0.0, %v1652
        %v1654 = vpop.f32.mrb[0].mxu0
        %1655 = vdwg.mxu0
        %v1657 = vsel %vm1230, %v1580, 0
        %1659 = vmatprep.subr.mxu0 0.0
        %1660 = vmatpush1.msra.mxu0 %v1227
        %1661 = vmatprep.subr.mxu0 0.0
        %1662 = vmatpush1.msra.mxu0 0.0
        %1663 = vmatprep.subr.mxu0 0.0
        %1664 = vmatpush1.msra.mxu0 0.0
        %1665 = vmatprep.subr.mxu0 0.0
        %1666 = vmatpush1.msra.mxu0 0.0
        %1667 = vmatprep.subr.mxu0 0.0
        %1668 = vmatpush1.msra.mxu0 0.0
        %1669 = vmatprep.subr.mxu0 0.0
        %1670 = vmatpush1.msra.mxu0 0.0
        %1671 = vmatprep.subr.mxu0 0.0
        %1672 = vmatpush1.msra.mxu0 0.0
        %1673 = vmatprep.subr.mxu0 0.0
        %1674 = vmatpush1.msra.mxu0 0.0
        %1675 = vmatprep.subr.mxu0 0.0
        %1676 = vmatpush1.msra.mxu0 0.0
        %1677 = vmatprep.subr.mxu0 0.0
        %1678 = vmatpush1.msra.mxu0 0.0
        %1679 = vmatprep.subr.mxu0 0.0
        %1680 = vmatpush1.msra.mxu0 0.0
        %1681 = vmatprep.subr.mxu0 0.0
        %1682 = vmatpush1.msra.mxu0 0.0
        %1683 = vmatprep.subr.mxu0 0.0
        %1684 = vmatpush1.msra.mxu0 0.0
        %1685 = vmatprep.subr.mxu0 0.0
        %1686 = vmatpush1.msra.mxu0 0.0
        %1687 = vmatprep.subr.mxu0 0.0
        %1688 = vmatpush1.msra.mxu0 0.0
        %1689 = vmatprep.subr.mxu0 0.0
        %1690 = vmatpush1.msra.mxu0 0.0
        %1691 = vmatprep.subr.mxu0 0.0
        %1692 = vmatpush1.msra.mxu0 0.0
        %1693 = vmatprep.subr.mxu0 0.0
        %1694 = vmatpush1.msra.mxu0 0.0
        %1695 = vmatprep.subr.mxu0 0.0
        %1696 = vmatpush1.msra.mxu0 0.0
        %1697 = vmatprep.subr.mxu0 0.0
        %1698 = vmatpush1.msra.mxu0 0.0
        %1699 = vmatprep.subr.mxu0 0.0
        %1700 = vmatpush1.msra.mxu0 0.0
        %1701 = vmatprep.subr.mxu0 0.0
        %1702 = vmatpush1.msra.mxu0 0.0
        %1703 = vmatprep.subr.mxu0 0.0
        %1704 = vmatpush1.msra.mxu0 0.0
        %1705 = vmatprep.subr.mxu0 0.0
        %1706 = vmatpush1.msra.mxu0 0.0
        %1707 = vmatprep.subr.mxu0 0.0
        %1708 = vmatpush1.msra.mxu0 0.0
        %1709 = vmatprep.subr.mxu0 0.0
        %1710 = vmatpush1.msra.mxu0 0.0
        %1711 = vmatprep.subr.mxu0 0.0
        %1712 = vmatpush1.msra.mxu0 0.0
        %1713 = vmatprep.subr.mxu0 0.0
        %1714 = vmatpush1.msra.mxu0 0.0
        %1715 = vmatprep.subr.mxu0 0.0
        %1716 = vmatpush1.msra.mxu0 0.0
        %1717 = vmatprep.subr.mxu0 0.0
        %1718 = vmatpush1.msra.mxu0 0.0
        %1719 = vmatprep.subr.mxu0 0.0
        %1720 = vmatpush1.msra.mxu0 0.0
        %1721 = vmatprep.subr.mxu0 0.0
        %1722 = vmatpush1.msra.mxu0 0.0
        %1723 = vmatprep.mubr.f32.mxu0 0.0
        %1724 = vmatmul.mubr.f32.gmra.mrb[0].mxu0 %v1657
        %v1725 = vpop.f32.mrb[0].mxu0
        %v1726 = vadd.f32 0.0, %v1725
        %v1727 = vpop.f32.mrb[0].mxu0
        %1728 = vdwg.mxu0
        %v1730 = vsel %vm1230, %v1581, 0
        %1732 = vmatprep.subr.mxu0 0.0
        %1733 = vmatpush1.msra.mxu0 %v1228
        %1734 = vmatprep.subr.mxu0 0.0
        %1735 = vmatpush1.msra.mxu0 0.0
        %1736 = vmatprep.subr.mxu0 0.0
        %1737 = vmatpush1.msra.mxu0 0.0
        %1738 = vmatprep.subr.mxu0 0.0
        %1739 = vmatpush1.msra.mxu0 0.0
        %1740 = vmatprep.subr.mxu0 0.0
        %1741 = vmatpush1.msra.mxu0 0.0
        %1742 = vmatprep.subr.mxu0 0.0
        %1743 = vmatpush1.msra.mxu0 0.0
        %1744 = vmatprep.subr.mxu0 0.0
        %1745 = vmatpush1.msra.mxu0 0.0
        %1746 = vmatprep.subr.mxu0 0.0
        %1747 = vmatpush1.msra.mxu0 0.0
        %1748 = vmatprep.subr.mxu0 0.0
        %1749 = vmatpush1.msra.mxu0 0.0
        %1750 = vmatprep.subr.mxu0 0.0
        %1751 = vmatpush1.msra.mxu0 0.0
        %1752 = vmatprep.subr.mxu0 0.0
        %1753 = vmatpush1.msra.mxu0 0.0
        %1754 = vmatprep.subr.mxu0 0.0
        %1755 = vmatpush1.msra.mxu0 0.0
        %1756 = vmatprep.subr.mxu0 0.0
        %1757 = vmatpush1.msra.mxu0 0.0
        %1758 = vmatprep.subr.mxu0 0.0
        %1759 = vmatpush1.msra.mxu0 0.0
        %1760 = vmatprep.subr.mxu0 0.0
        %1761 = vmatpush1.msra.mxu0 0.0
        %1762 = vmatprep.subr.mxu0 0.0
        %1763 = vmatpush1.msra.mxu0 0.0
        %1764 = vmatprep.subr.mxu0 0.0
        %1765 = vmatpush1.msra.mxu0 0.0
        %1766 = vmatprep.subr.mxu0 0.0
        %1767 = vmatpush1.msra.mxu0 0.0
        %1768 = vmatprep.subr.mxu0 0.0
        %1769 = vmatpush1.msra.mxu0 0.0
        %1770 = vmatprep.subr.mxu0 0.0
        %1771 = vmatpush1.msra.mxu0 0.0
        %1772 = vmatprep.subr.mxu0 0.0
        %1773 = vmatpush1.msra.mxu0 0.0
        %1774 = vmatprep.subr.mxu0 0.0
        %1775 = vmatpush1.msra.mxu0 0.0
        %1776 = vmatprep.subr.mxu0 0.0
        %1777 = vmatpush1.msra.mxu0 0.0
        %1778 = vmatprep.subr.mxu0 0.0
        %1779 = vmatpush1.msra.mxu0 0.0
        %1780 = vmatprep.subr.mxu0 0.0
        %1781 = vmatpush1.msra.mxu0 0.0
        %1782 = vmatprep.subr.mxu0 0.0
        %1783 = vmatpush1.msra.mxu0 0.0
        %1784 = vmatprep.subr.mxu0 0.0
        %1785 = vmatpush1.msra.mxu0 0.0
        %1786 = vmatprep.subr.mxu0 0.0
        %1787 = vmatpush1.msra.mxu0 0.0
        %1788 = vmatprep.subr.mxu0 0.0
        %1789 = vmatpush1.msra.mxu0 0.0
        %1790 = vmatprep.subr.mxu0 0.0
        %1791 = vmatpush1.msra.mxu0 0.0
        %1792 = vmatprep.subr.mxu0 0.0
        %1793 = vmatpush1.msra.mxu0 0.0
        %1794 = vmatprep.subr.mxu0 0.0
        %1795 = vmatpush1.msra.mxu0 0.0
        %1796 = vmatprep.mubr.f32.mxu0 0.0
        %1797 = vmatmul.mubr.f32.gmra.mrb[0].mxu0 %v1730
        %v1798 = vpop.f32.mrb[0].mxu0
        %v1799 = vadd.f32 0.0, %v1798
        %v1800 = vpop.f32.mrb[0].mxu0
        %1801 = vdwg.mxu0
        %v1803 = vsel %vm1230, %v1582, 0
        %1805 = vmatprep.subr.mxu0 0.0
        %1806 = vmatpush1.msra.mxu0 %v1229
        %1807 = vmatprep.subr.mxu0 0.0
        %1808 = vmatpush1.msra.mxu0 0.0
        %1809 = vmatprep.subr.mxu0 0.0
        %1810 = vmatpush1.msra.mxu0 0.0
        %1811 = vmatprep.subr.mxu0 0.0
        %1812 = vmatpush1.msra.mxu0 0.0
        %1813 = vmatprep.subr.mxu0 0.0
        %1814 = vmatpush1.msra.mxu0 0.0
        %1815 = vmatprep.subr.mxu0 0.0
        %1816 = vmatpush1.msra.mxu0 0.0
        %1817 = vmatprep.subr.mxu0 0.0
        %1818 = vmatpush1.msra.mxu0 0.0
        %1819 = vmatprep.subr.mxu0 0.0
        %1820 = vmatpush1.msra.mxu0 0.0
        %1821 = vmatprep.subr.mxu0 0.0
        %1822 = vmatpush1.msra.mxu0 0.0
        %1823 = vmatprep.subr.mxu0 0.0
        %1824 = vmatpush1.msra.mxu0 0.0
        %1825 = vmatprep.subr.mxu0 0.0
        %1826 = vmatpush1.msra.mxu0 0.0
        %1827 = vmatprep.subr.mxu0 0.0
        %1828 = vmatpush1.msra.mxu0 0.0
        %1829 = vmatprep.subr.mxu0 0.0
        %1830 = vmatpush1.msra.mxu0 0.0
        %1831 = vmatprep.subr.mxu0 0.0
        %1832 = vmatpush1.msra.mxu0 0.0
        %1833 = vmatprep.subr.mxu0 0.0
        %1834 = vmatpush1.msra.mxu0 0.0
        %1835 = vmatprep.subr.mxu0 0.0
        %1836 = vmatpush1.msra.mxu0 0.0
        %1837 = vmatprep.subr.mxu0 0.0
        %1838 = vmatpush1.msra.mxu0 0.0
        %1839 = vmatprep.subr.mxu0 0.0
        %1840 = vmatpush1.msra.mxu0 0.0
        %1841 = vmatprep.subr.mxu0 0.0
        %1842 = vmatpush1.msra.mxu0 0.0
        %1843 = vmatprep.subr.mxu0 0.0
        %1844 = vmatpush1.msra.mxu0 0.0
        %1845 = vmatprep.subr.mxu0 0.0
        %1846 = vmatpush1.msra.mxu0 0.0
        %1847 = vmatprep.subr.mxu0 0.0
        %1848 = vmatpush1.msra.mxu0 0.0
        %1849 = vmatprep.subr.mxu0 0.0
        %1850 = vmatpush1.msra.mxu0 0.0
        %1851 = vmatprep.subr.mxu0 0.0
        %1852 = vmatpush1.msra.mxu0 0.0
        %1853 = vmatprep.subr.mxu0 0.0
        %1854 = vmatpush1.msra.mxu0 0.0
        %1855 = vmatprep.subr.mxu0 0.0
        %1856 = vmatpush1.msra.mxu0 0.0
        %1857 = vmatprep.subr.mxu0 0.0
        %1858 = vmatpush1.msra.mxu0 0.0
        %1859 = vmatprep.subr.mxu0 0.0
        %1860 = vmatpush1.msra.mxu0 0.0
        %1861 = vmatprep.subr.mxu0 0.0
        %1862 = vmatpush1.msra.mxu0 0.0
        %1863 = vmatprep.subr.mxu0 0.0
        %1864 = vmatpush1.msra.mxu0 0.0
        %1865 = vmatprep.subr.mxu0 0.0
        %1866 = vmatpush1.msra.mxu0 0.0
        %1867 = vmatprep.subr.mxu0 0.0
        %1868 = vmatpush1.msra.mxu0 0.0
        %1869 = vmatprep.mubr.f32.mxu0 0.0
        %1870 = vmatmul.mubr.f32.gmra.mrb[0].mxu0 %v1803
        %v1871 = vpop.f32.mrb[0].mxu0
        %v1872 = vadd.f32 0.0, %v1871
        %v1873 = vpop.f32.mrb[0].mxu0
        %1874 = vdwg.mxu0
        %v1875 = vcombine.low %v1653, %v1799
        %v1876 = vcombine.high %v1653, %v1799
        %v1878 = vunpack.c.l.s4 1983009808
        %v1879 = vunpack.c.0.s8 %v1878
        %v1880 = vlaneseq
        %v1881 = vshrl.u32 %v1880, 7
        %v1882 = vsub.s32 %v1879, %v1881
        %v1883 = vrot.slane %v1875, %v1882
        %v1885 = vunpack.c.l.s4 1983009808
        %v1886 = vunpack.c.0.s8 %v1885
        %v1887 = vlaneseq
        %v1888 = vshrl.u32 %v1887, 7
        %v1889 = vsub.s32 %v1886, %v1888
        %v1890 = vrot.slane %v1876, %v1889
        %v1891 = vcombine.low %v1726, %v1872
        %v1892 = vcombine.high %v1726, %v1872
        %v1894 = vunpack.c.l.s4 1983009808
        %v1895 = vunpack.c.0.s8 %v1894
        %v1896 = vlaneseq
        %v1897 = vshrl.u32 %v1896, 7
        %v1898 = vsub.s32 %v1895, %v1897
        %v1899 = vrot.slane %v1891, %v1898
        %v1901 = vunpack.c.l.s4 1983009808
        %v1902 = vunpack.c.0.s8 %v1901
        %v1903 = vlaneseq
        %v1904 = vshrl.u32 %v1903, 7
        %v1905 = vsub.s32 %v1902, %v1904
        %v1906 = vrot.slane %v1892, %v1905
        %v1907 = vcombine.low %v1883, %v1899
        %v1908 = vcombine.high %v1883, %v1899
        %v1910 = vunpack.c.l.s4 1934713408
        %v1911 = vunpack.c.0.s8 %v1910
        %v1912 = vlaneseq
        %v1913 = vshrl.u32 %v1912, 7
        %v1914 = vsub.s32 %v1911, %v1913
        %v1915 = vrot.slane %v1907, %v1914
        %v1917 = vunpack.c.l.s4 1934713408
        %v1918 = vunpack.c.0.s8 %v1917
        %v1919 = vlaneseq
        %v1920 = vshrl.u32 %v1919, 7
        %v1921 = vsub.s32 %v1918, %v1920
        %v1922 = vrot.slane %v1908, %v1921
        %v1923 = vcombine.low %v1890, %v1906
        %v1924 = vcombine.high %v1890, %v1906
        %v1926 = vunpack.c.l.s4 1934713408
        %v1927 = vunpack.c.0.s8 %v1926
        %v1928 = vlaneseq
        %v1929 = vshrl.u32 %v1928, 7
        %v1930 = vsub.s32 %v1927, %v1929
        %v1931 = vrot.slane %v1923, %v1930
        %v1933 = vunpack.c.l.s4 1934713408
        %v1934 = vunpack.c.0.s8 %v1933
        %v1935 = vlaneseq
        %v1936 = vshrl.u32 %v1935, 7
        %v1937 = vsub.s32 %v1934, %v1936
        %v1938 = vrot.slane %v1924, %v1937
        %v1939 = vcombine.high %v1915, 0.0
        %v1940 = vcombine.high %v1922, 0.0
        %v1941 = vcombine.high %v1931, 0.0
        %v1942 = vcombine.high %v1938, 0.0
        %v1943 = vcombine.low %v1915, %v1922
        %v1945 = vunpack.c.l.s4 1983009808
        %v1946 = vunpack.c.0.s8 %v1945
        %v1947 = vlaneseq
        %v1948 = vshrl.u32 %v1947, 7
        %v1949 = vsub.s32 %v1946, %v1948
        %v1950 = vrot.slane %v1943, %v1949
        %v1951 = vcombine.low %v1939, %v1940
        %v1953 = vunpack.c.l.s4 1983009808
        %v1954 = vunpack.c.0.s8 %v1953
        %v1955 = vlaneseq
        %v1956 = vshrl.u32 %v1955, 7
        %v1957 = vsub.s32 %v1954, %v1956
        %v1958 = vrot.slane %v1951, %v1957
        %v1959 = vcombine.low %v1931, %v1938
        %v1961 = vunpack.c.l.s4 1983009808
        %v1962 = vunpack.c.0.s8 %v1961
        %v1963 = vlaneseq
        %v1964 = vshrl.u32 %v1963, 7
        %v1965 = vsub.s32 %v1962, %v1964
        %v1966 = vrot.slane %v1959, %v1965
        %v1967 = vcombine.low %v1941, %v1942
        %v1969 = vunpack.c.l.s4 1983009808
        %v1970 = vunpack.c.0.s8 %v1969
        %v1971 = vlaneseq
        %v1972 = vshrl.u32 %v1971, 7
        %v1973 = vsub.s32 %v1970, %v1972
        %v1974 = vrot.slane %v1967, %v1973
        %v1975 = vcombine.low %v1950, %v1958
        %v1976 = vcombine.high %v1950, %v1958
        %v1978 = vunpack.c.l.s4 1934713408
        %v1979 = vunpack.c.0.s8 %v1978
        %v1980 = vlaneseq
        %v1981 = vshrl.u32 %v1980, 7
        %v1982 = vsub.s32 %v1979, %v1981
        %v1983 = vrot.slane %v1975, %v1982
        %v1985 = vunpack.c.l.s4 1934713408
        %v1986 = vunpack.c.0.s8 %v1985
        %v1987 = vlaneseq
        %v1988 = vshrl.u32 %v1987, 7
        %v1989 = vsub.s32 %v1986, %v1988
        %v1990 = vrot.slane %v1976, %v1989
        %v1991 = vcombine.low %v1966, %v1974
        %v1992 = vcombine.high %v1966, %v1974
        %v1994 = vunpack.c.l.s4 1934713408
        %v1995 = vunpack.c.0.s8 %v1994
        %v1996 = vlaneseq
        %v1997 = vshrl.u32 %v1996, 7
        %v1998 = vsub.s32 %v1995, %v1997
        %v1999 = vrot.slane %v1991, %v1998
        %v2001 = vunpack.c.l.s4 1934713408
        %v2002 = vunpack.c.0.s8 %v2001
        %v2003 = vlaneseq
        %v2004 = vshrl.u32 %v2003, 7
        %v2005 = vsub.s32 %v2002, %v2004
        %v2006 = vrot.slane %v1992, %v2005
        %v2007 = vcombine.low %v1983, %v1999
        %v2008 = vcombine.high %v1983, %v1999
        %v2009 = vcombine.low %v1990, %v2006
        %v2010 = vcombine.high %v1990, %v2006
        %2012 = vrot.lane.b32.xlu0 %v2008, 8
        %v2013 = vpop.permute.xlu0 %2012
        %2016 = vrot.lane.b32.xlu0 %v2009, 16
        %v2017 = vpop.permute.xlu0 %2016
        %2020 = vrot.lane.b32.xlu0 %v2010, 24
        %v2021 = vpop.permute.xlu0 %2020
        %v2023 = vsel %vm1230, %v2007, %v2013
        %vm2024 = vcmask 130048
        %v2025 = vsel %vm2024, %v2023, %v2017
        %vm2026 = vcmask 195584
        %v2027 = vsel %vm2026, %v2025, %v2021
        %v2028 = vld [vmem:[%s9] sm:$0xff]
        %v2029 = vld [vmem:[%s9 + $0x8] sm:$0xff]
        %v2030 = vld [vmem:[%s9 + $0x10] sm:$0xff]
        %v2031 = vld [vmem:[%s9 + $0x18] sm:$0xff]
        %v2032 = vld [vmem:[%s10] sm:$0x1]
        %v2034 = vlaneseq
        %v2035 = vshrl.u32 %v2034, 7
        %v2036 = vsub.s32 0, %v2035
        %v2037 = vrot.slane %v2032, %v2036
        %v2040 = vsel %vm541, %v2027, 0
        %2042 = vmatprep.subr.mxu0 0.0
        %2043 = vmatpush1.msra.mxu0 %v2028
        %2044 = vmatprep.subr.mxu0 0.0
        %2045 = vmatpush1.msra.mxu0 %v2029
        %2046 = vmatprep.subr.mxu0 0.0
        %2047 = vmatpush1.msra.mxu0 %v2030
        %2048 = vmatprep.subr.mxu0 0.0
        %2049 = vmatpush1.msra.mxu0 %v2031
        %2050 = vmatprep.subr.mxu0 0.0
        %2051 = vmatpush1.msra.mxu0 0.0
        %2052 = vmatprep.subr.mxu0 0.0
        %2053 = vmatpush1.msra.mxu0 0.0
        %2054 = vmatprep.subr.mxu0 0.0
        %2055 = vmatpush1.msra.mxu0 0.0
        %2056 = vmatprep.subr.mxu0 0.0
        %2057 = vmatpush1.msra.mxu0 0.0
        %2058 = vmatprep.subr.mxu0 0.0
        %2059 = vmatpush1.msra.mxu0 0.0
        %2060 = vmatprep.subr.mxu0 0.0
        %2061 = vmatpush1.msra.mxu0 0.0
        %2062 = vmatprep.subr.mxu0 0.0
        %2063 = vmatpush1.msra.mxu0 0.0
        %2064 = vmatprep.subr.mxu0 0.0
        %2065 = vmatpush1.msra.mxu0 0.0
        %2066 = vmatprep.subr.mxu0 0.0
        %2067 = vmatpush1.msra.mxu0 0.0
        %2068 = vmatprep.subr.mxu0 0.0
        %2069 = vmatpush1.msra.mxu0 0.0
        %2070 = vmatprep.subr.mxu0 0.0
        %2071 = vmatpush1.msra.mxu0 0.0
        %2072 = vmatprep.subr.mxu0 0.0
        %2073 = vmatpush1.msra.mxu0 0.0
        %2074 = vmatprep.subr.mxu0 0.0
        %2075 = vmatpush1.msra.mxu0 0.0
        %2076 = vmatprep.subr.mxu0 0.0
        %2077 = vmatpush1.msra.mxu0 0.0
        %2078 = vmatprep.subr.mxu0 0.0
        %2079 = vmatpush1.msra.mxu0 0.0
        %2080 = vmatprep.subr.mxu0 0.0
        %2081 = vmatpush1.msra.mxu0 0.0
        %2082 = vmatprep.subr.mxu0 0.0
        %2083 = vmatpush1.msra.mxu0 0.0
        %2084 = vmatprep.subr.mxu0 0.0
        %2085 = vmatpush1.msra.mxu0 0.0
        %2086 = vmatprep.subr.mxu0 0.0
        %2087 = vmatpush1.msra.mxu0 0.0
        %2088 = vmatprep.subr.mxu0 0.0
        %2089 = vmatpush1.msra.mxu0 0.0
        %2090 = vmatprep.subr.mxu0 0.0
        %2091 = vmatpush1.msra.mxu0 0.0
        %2092 = vmatprep.subr.mxu0 0.0
        %2093 = vmatpush1.msra.mxu0 0.0
        %2094 = vmatprep.subr.mxu0 0.0
        %2095 = vmatpush1.msra.mxu0 0.0
        %2096 = vmatprep.subr.mxu0 0.0
        %2097 = vmatpush1.msra.mxu0 0.0
        %2098 = vmatprep.subr.mxu0 0.0
        %2099 = vmatpush1.msra.mxu0 0.0
        %2100 = vmatprep.subr.mxu0 0.0
        %2101 = vmatpush1.msra.mxu0 0.0
        %2102 = vmatprep.subr.mxu0 0.0
        %2103 = vmatpush1.msra.mxu0 0.0
        %2104 = vmatprep.subr.mxu0 0.0
        %2105 = vmatpush1.msra.mxu0 0.0
        %2106 = vmatprep.mubr.f32.mxu0 0.0
        %2107 = vmatmul.mubr.f32.gmra.mrb[0].mxu0 %v2040
        %v2108 = vpop.f32.mrb[0].mxu0
        %v2109 = vadd.f32 %v2037, %v2108
        %v2110 = vpop.f32.mrb[0].mxu0
        %2111 = vdwg.mxu0
        %2112 = vst.msk [vmem:[%s528] sm:$0xff] %vm541, %v2109
        %s2113 = sand.u32 %s287, 1
        %s2114 = scalar_lea.sflag [#allocation4], %s2113
        %s2115 = sand.u32 %s287, 1
        %s2116 = smul.addr %s2115, 8
        %s2117 = scalar_lea.vmem [#allocation14], %s2116
        // Predicated region
        $region93: #{tpu_custom_call.1} parent=63 // pred_check
          %p2118 = pneg %p297
        $region94: #{tpu_custom_call.1} parent=63 // pred_check_branch
          %2120 = sbr.rel (%p2118) target = $region96
        $region95: #{tpu_custom_call.1} parent=63 // pred_region
          %s2122 = ssub.s32 128, 128
          %2123 = vsyncadd %s2114, %s2122
          %s2124 = smul.addr %s33, 128
          %s2125 = scalar_lea.hbm %s11, %s2124
          %s2127 = sshll.u32 %s2117, 4
          %s2128 = int_to_ptr.vmem [resolvable:$true] %s2127
          %2130 = dma.vmem_to_hbm [thread:$0]  %s2128, 128, %s2125, %s2114
        $region96: #{tpu_custom_call.1} parent=63 // pred_fallthru
          _
      $region64: #{tpu_custom_call.1} parent=5 // pred_fallthru
        _
      %p2131 = scmp.le.s32.totalorder 2, %s28
      // Predicated region
      $region97: #{tpu_custom_call.1} parent=5 // pred_check
        %p2132 = pneg %p2131
      $region98: #{tpu_custom_call.1} parent=5 // pred_check_branch
        %2134 = sbr.rel (%p2132) target = $region100
      $region99: #{tpu_custom_call.1} parent=5 // pred_region
        %s2135 = ssub.s32 %s28, 2
        // Predicated region
        $region101: #{tpu_custom_call.1} parent=99 // pred_check
          %p2136 = pneg %p303
        $region102: #{tpu_custom_call.1} parent=99 // pred_check_branch
          %2138 = sbr.rel (%p2136) target = $region104
        $region103: #{tpu_custom_call.1} parent=99 // pred_region
          %s2139 = sand.u32 %s288, 1
          %s2140 = scalar_lea.sflag [#allocation4], %s2139
          %s2141 = sand.u32 %s288, 1
          %s2142 = smul.addr %s2141, 8
          %s2143 = scalar_lea.vmem [#allocation14], %s2142
          %2144 = dma.done %s2140, 128
        $region104: #{tpu_custom_call.1} parent=99 // pred_fallthru
          _
      $region100: #{tpu_custom_call.1} parent=5 // pred_fallthru
        _
    $region6: #{tpu_custom_call.1} parent=1 // loop_footer
      %s32 = sadd.s32 1, %s28
    $region7: #{tpu_custom_call.1} parent=1 // loop_footer_branch
      %27 = sbr.rel target = $region3
    $region8: #{tpu_custom_call.1} parent=1 // loop_exit
      _
    %2145 = vsyncpa [#allocation3], 1
    %s2146 = scalar_lea.sflag [#allocation3], 1
    %2147 = vsyncpa %s2146, 1
    %2148 = vsyncpa [#allocation6], 1
    %s2149 = scalar_lea.sflag [#allocation6], 1
    %2150 = vsyncpa %s2149, 1
    %2151 = vsyncpa [#allocation9], 1
    %2152 = vsyncpa [#allocation12], 1
    %2153 = vsyncpa [#allocation4], 1
    %s2154 = scalar_lea.sflag [#allocation4], 1
    %2155 = vsyncpa %s2154, 1

</llo_original>
